<compile_context>
chip_gen: v5e
topology: v5e:2x2
jax: 0.10.0
libtpu: 0.0.40
codegen_flags: <defaults>
</compile_context>

<pallas_src>
import functools

import jax
import jax.numpy as jnp
from jax.experimental import pallas as pl
from jax.experimental.pallas import tpu as pltpu

ATTN_NEG_SLOPE = 0.2     # LeakyReLU inside the attention (GAT standard)
OUT_NEG_SLOPE = 0.01     # F.leaky_relu default (AttnCombine(leaky_relu=True))
NEG_BIG = -1e30          # neighbour-score of the "null" row -> softmax weight 0
LANE = 128
SUBLANE = 16             # row-tile granularity safe for both f32 and bf16 tiling
VMEM_LIMIT_BYTES = 32 * 1024 * 1024   # explicit; conservative for v7x (64 MiB phys)
ATTN_VMEM_BUDGET = 8 * 1024 * 1024    # budget for the double-buffered attention tile


def _round_up(x, m):
    return ((x + m - 1) // m) * m


def _pick_tile(n_rows, max_tile, gran=SUBLANE):
    """Row tile: multiple of `gran`, <= max_tile, and >=2 grid steps whenever the
    extent allows it (so both TensorCores on v7x get work)."""
    n_g = _round_up(max(n_rows, 1), gran)
    if n_g <= gran:
        return gran
    if n_g > max_tile:
        return max_tile
    return _round_up((n_g + 1) // 2, gran)


def _cap_tile_by_vmem(tile, per_row_bytes, budget=ATTN_VMEM_BUDGET, gran=SUBLANE):
    """Cap a row tile so the double-buffered tile (+output) fits the VMEM budget."""
    max_rows = max(gran, (budget // (2 * per_row_bytes)) // gran * gran)
    return min(tile, max_rows)


# ---------------------------------------------------------------------------
# Kernel 1: node projection   Z_aug = X @ W_aug + b_aug   (every node once)
#   W_aug columns = [ W | W a_self | W a_neigh | 0-pad ]   (lane width 128k)
#   -> column d_out   of Z_aug is the per-node "self"   score (incl. attn bias)
#      column d_out+1 of Z_aug is the per-node "neighbour" score
# ---------------------------------------------------------------------------
def _project_kernel(x_ref, w_ref, b_ref, z_ref):
    acc = jnp.dot(x_ref[...], w_ref[...], preferred_element_type=jnp.float32)
    z_ref[...] = (acc + b_ref[...]).astype(z_ref.dtype)


def _project(x, w_aug, b_aug, *, row_tile=512, out_dtype=jnp.bfloat16):
    n, d_in_pad = x.shape
    d_out_pad = w_aug.shape[1]
    tn = _pick_tile(n, row_tile)
    n_pad = _round_up(n, tn)
    if n_pad != n:
        x = jnp.pad(x, ((0, n_pad - n), (0, 0)))
    return pl.pallas_call(
        _project_kernel,
        out_shape=jax.ShapeDtypeStruct((n_pad, d_out_pad), out_dtype),
        grid_spec=pltpu.PrefetchScalarGridSpec(
            num_scalar_prefetch=0,
            grid=(n_pad // tn,),
            in_specs=[
                pl.BlockSpec((tn, d_in_pad), lambda i: (i, 0)),          # X tile
                pl.BlockSpec((d_in_pad, d_out_pad), lambda i: (0, 0)),   # W_aug (resident)
                pl.BlockSpec((1, d_out_pad), lambda i: (0, 0)),          # bias  (resident)
            ],
            out_specs=pl.BlockSpec((tn, d_out_pad), lambda i: (i, 0)),
        ),
        compiler_params=pltpu.CompilerParams(
            dimension_semantics=("parallel",),
            vmem_limit_bytes=VMEM_LIMIT_BYTES),
    )(x, w_aug, b_aug)


# ---------------------------------------------------------------------------
# Kernel 2: attention scores + masked softmax + weighted aggregation
#   Sole input: pre-gathered projected neighbour rows [tb, K, d_out_pad] (bf16).
#   Slot 0 carries the self-loop row; invalid / padded slots carry the null row.
# ---------------------------------------------------------------------------
def _gat_attn_kernel(neighz_ref, out_ref, *, d_out, apply_leaky_relu, apply_relu):
    zs = neighz_ref[...].astype(jnp.float32)          # [tb, k, dp]; softmax math in f32

    # Folded score columns:  col d_out = z·a_self + a_bias ; col d_out+1 = z·a_neigh
    s_self = zs[:, :, d_out][:, 0:1]                  # [tb, 1]   (slot-0 = self loop)
    s_neigh = zs[:, :, d_out + 1]                     # [tb, k]   (-1e30 on null slots)

    e = s_self + s_neigh                              # a_self·z_i + a_neigh·z_j + a_b
    e = jnp.where(e >= 0, e, ATTN_NEG_SLOPE * e)      # LeakyReLU(0.2)
    e = e - jnp.max(e, axis=-1, keepdims=True)
    p = jnp.exp(e)                                    # null slots -> exactly 0
    denom = jnp.sum(p, axis=-1, keepdims=True)        # >= 1 always (self slot / all-equal)
    alpha = p / denom                                 # [tb, k]

    out = jnp.sum(alpha[:, :, None] * zs, axis=1)     # [tb, dp]

    if apply_leaky_relu:
        out = jnp.where(out >= 0, out, OUT_NEG_SLOPE * out)
    if apply_relu:
        out = jnp.maximum(out, 0.0)
    out_ref[...] = out.astype(out_ref.dtype)


def _attention(neigh_z, *, d_out, leaky_relu, relu, out_dtype, tb):
    b_pad, k, d_out_pad = neigh_z.shape
    kernel = functools.partial(_gat_attn_kernel, d_out=d_out,
                               apply_leaky_relu=leaky_relu, apply_relu=relu)
    return pl.pallas_call(
        kernel,
        out_shape=jax.ShapeDtypeStruct((b_pad, d_out_pad), out_dtype),
        grid_spec=pltpu.PrefetchScalarGridSpec(
            num_scalar_prefetch=0,
            grid=(b_pad // tb,),
            in_specs=[pl.BlockSpec((tb, k, d_out_pad), lambda i: (i, 0, 0))],
            out_specs=pl.BlockSpec((tb, d_out_pad), lambda i: (i, 0)),
        ),
        compiler_params=pltpu.CompilerParams(
            dimension_semantics=("parallel",),
            vmem_limit_bytes=VMEM_LIMIT_BYTES),
    )(neigh_z)


# ---------------------------------------------------------------------------
# One AttnCombine(AttnAggregator) layer
# ---------------------------------------------------------------------------
def gat_layer(x, query_idx, neigh_idx, neigh_mask,
              w, b, a_self, a_neigh, a_bias, *,
              n_nodes, leaky_relu, relu,
              proj_dtype=jnp.bfloat16, out_dtype=jnp.float32,
              row_tile=512, batch_tile=512):
    """One GAT layer for a batch of query nodes.

    `x` may be wider than w.shape[0] (lane-padded output of the previous layer):
    the extra columns are annihilated by the zero rows appended to W.
    Returns a lane-dense, row-padded [b_pad, d_out_pad] table (caller slices)."""
    d_in, d_out = w.shape
    k = neigh_idx.shape[1]
    bsz = query_idx.shape[0]

    d_in_pad = _round_up(max(x.shape[1], d_in), LANE)
    d_out_pad = _round_up(d_out + 2, LANE)

    w = w.astype(jnp.float32)
    b = b.reshape(d_out).astype(jnp.float32)
    a_s = a_self.reshape(d_out, 1).astype(jnp.float32)
    a_n = a_neigh.reshape(d_out, 1).astype(jnp.float32)
    a_bias = jnp.asarray(a_bias, jnp.float32)

    # Fold the attention vectors (and attention bias) into two extra projection
    # columns:  col d_out = z·a_self + a_bias ;  col d_out+1 = z·a_neigh
    w_aug = jnp.concatenate([w, w @ a_s, w @ a_n], axis=1)
    b_aug = jnp.concatenate(
        [b,
         (jnp.dot(b, a_s[:, 0]) + a_bias)[None],
         jnp.dot(b, a_n[:, 0])[None]], axis=0)
    w_aug = jnp.pad(w_aug, ((0, d_in_pad - d_in), (0, d_out_pad - (d_out + 2))))
    b_aug = jnp.pad(b_aug, (0, d_out_pad - (d_out + 2))).reshape(1, d_out_pad)

    # Lane-dense input: previous-layer outputs arrive already 128-wide (no copy);
    # only the raw feature table needs column padding.
    if x.shape[1] < d_in_pad:
        x = jnp.pad(x, ((0, 0), (0, d_in_pad - x.shape[1])))
    x = x.astype(proj_dtype)

    # --- projection: every node projected exactly once, bf16 table (MXU, f32 acc)
    zp = _project(x, w_aug.astype(proj_dtype), b_aug,
                  row_tile=row_tile, out_dtype=proj_dtype)

    # "Null" row for invalid / padded neighbour slots: zero features and a -1e30
    # neighbour-score column -> softmax weight 0 (replaces the mask side input
    # and the denominator guard of the previous version).
    null_row = jnp.zeros((1, d_out_pad), proj_dtype).at[0, d_out + 1].set(NEG_BIG)
    zp_ext = jnp.concatenate([zp[:n_nodes], null_row], axis=0)

    # Attention batch tile: >=2 grid steps when possible, VMEM-budget capped.
    per_row_bytes = (k * d_out_pad * jnp.dtype(proj_dtype).itemsize
                     + d_out_pad * jnp.dtype(out_dtype).itemsize)
    tb = _cap_tile_by_vmem(_pick_tile(bsz, batch_tile), per_row_bytes)
    b_pad = _round_up(bsz, tb)

    # Per-query neighbour indices: slot 0 is forced to the self loop
    # (agg_self_loop=True); invalid slots and padded query rows -> null row.
    query_idx = query_idx.astype(jnp.int32)
    safe_idx = jnp.where(neigh_mask, neigh_idx, n_nodes).astype(jnp.int32)
    q_neigh = jnp.take(safe_idx, query_idx, axis=0).at[:, 0].set(query_idx)
    q_neigh = jnp.pad(q_neigh, ((0, b_pad - bsz), (0, 0)), constant_values=n_nodes)

    # TODO(synk): the neighbour-row gather stays in XLA glue; an in-kernel fused
    # gather (scalar-prefetched indices + per-row DMA) only wins for >=1-2 KiB rows.
    neigh_z = jnp.take(zp_ext, q_neigh.reshape(-1), axis=0
                       ).reshape(b_pad, k, d_out_pad)

    return _attention(neigh_z, d_out=d_out, leaky_relu=leaky_relu, relu=relu,
                      out_dtype=out_dtype, tb=tb)


def gat_conv_forward(label_idx, features, neigh_idx, neigh_mask, params,
                     *, proj_dtype=jnp.bfloat16):
    """GATConv.forward: stacked AttnCombine layers; inner layer evaluated for all
    graph nodes, outer layer applied to the requested label nodes."""
    n_nodes = features.shape[0]
    all_nodes = jnp.arange(n_nodes, dtype=jnp.int32)
    d_lbl = params["w2"].shape[1]

    # layer 1 (inner encoder, options['gnn'][-1]): hidden layer, relu=True.
    # Output stays 128-lane padded bf16 so layer 2's projection consumes it directly.
    h1 = gat_layer(features, all_nodes, neigh_idx, neigh_mask,
                   params["w1"], params["b1"],
                   params["a1_self"], params["a1_neigh"], params["a1_bias"],
                   n_nodes=n_nodes, leaky_relu=False, relu=True,
                   proj_dtype=proj_dtype, out_dtype=proj_dtype)

    # layer 2 (outer encoder / gnn_modules[-1]): output layer, no activation.
    h2 = gat_layer(h1, label_idx, neigh_idx, neigh_mask,
                   params["w2"], params["b2"],
                   params["a2_self"], params["a2_neigh"], params["a2_bias"],
                   n_nodes=n_nodes, leaky_relu=False, relu=False,
                   proj_dtype=proj_dtype, out_dtype=jnp.float32)
    return h2[:label_idx.shape[0], :d_lbl]


# ---------------------------------------------------------------------------
# Pure-JAX f32 reference (same semantics), used only for the self-check below.
# ---------------------------------------------------------------------------
def _ref_layer(x, query_idx, neigh_idx, neigh_mask, w, b, a_s, a_n, a_b,
               *, leaky_relu, relu):
    z = x[:, :w.shape[0]].astype(jnp.float32) @ w + b            # [N, d_out]
    q_idx = jnp.take(neigh_idx, query_idx, axis=0).at[:, 0].set(query_idx)
    q_msk = jnp.take(neigh_mask, query_idx, axis=0).at[:, 0].set(True)
    zj = z[q_idx]                                                # [B, K, d_out]
    e = (z[query_idx] @ a_s + a_b)[:, None] + zj @ a_n           # [B, K]
    e = jnp.where(e >= 0, e, ATTN_NEG_SLOPE * e)
    e = jnp.where(q_msk, e, -jnp.inf)
    alpha = jax.nn.softmax(e, axis=-1)
    out = jnp.einsum("bk,bkd->bd", alpha, zj)
    if leaky_relu:
        out = jnp.where(out >= 0, out, OUT_NEG_SLOPE * out)
    if relu:
        out = jnp.maximum(out, 0.0)
    return out


def gat_conv_reference(label_idx, features, neigh_idx, neigh_mask, params):
    n_nodes = features.shape[0]
    all_nodes = jnp.arange(n_nodes, dtype=jnp.int32)
    h1 = _ref_layer(features, all_nodes, neigh_idx, neigh_mask,
                    params["w1"], params["b1"], params["a1_self"],
                    params["a1_neigh"], params["a1_bias"],
                    leaky_relu=False, relu=True)
    return _ref_layer(h1, label_idx, neigh_idx, neigh_mask,
                      params["w2"], params["b2"], params["a2_self"],
                      params["a2_neigh"], params["a2_bias"],
                      leaky_relu=False, relu=False)


if __name__ == "__main__":
    # small, TPU-friendly synthetic sizes
    N_NODES, K_NEIGH = 32, 8          # graph nodes, num_sample neighbours
    D_IN, D_HID, D_LBL = 32, 32, 16   # feature dim, hidden output_dim, label_dim
    N_LABELS = 8

    key = jax.random.PRNGKey(0)
    ks = jax.random.split(key, 9)

    # frozen pretrained features (nn.Embedding.from_pretrained)
    features = jax.random.normal(ks[0], (N_NODES, D_IN), jnp.float32)

    # deterministic padded adjacency: slot 0 = self loop, ragged via valid counts
    neigh_idx = jax.random.randint(ks[1], (N_NODES, K_NEIGH), 0, N_NODES,
                                   dtype=jnp.int32)
    neigh_idx = neigh_idx.at[:, 0].set(jnp.arange(N_NODES, dtype=jnp.int32))
    valid_counts = 1 + (jnp.arange(N_NODES) % K_NEIGH)
    neigh_mask = jnp.arange(K_NEIGH)[None, :] < valid_counts[:, None]

    params = {
        "w1": jax.random.normal(ks[2], (D_IN, D_HID), jnp.float32) / jnp.sqrt(D_IN),
        "b1": 0.01 * jax.random.normal(ks[3], (D_HID,), jnp.float32),
        "a1_self": 0.1 * jax.random.normal(ks[4], (D_HID,), jnp.float32),
        "a1_neigh": 0.1 * jax.random.normal(ks[5], (D_HID,), jnp.float32),
        "a1_bias": jnp.float32(0.0),
        "w2": jax.random.normal(ks[6], (D_HID, D_LBL), jnp.float32) / jnp.sqrt(D_HID),
        "b2": jnp.zeros((D_LBL,), jnp.float32),
        "a2_self": 0.1 * jax.random.normal(ks[7], (D_LBL,), jnp.float32),
        "a2_neigh": 0.1 * jax.random.normal(ks[8], (D_LBL,), jnp.float32),
        "a2_bias": jnp.float32(0.0),
    }

    label_idx = jnp.arange(N_LABELS, dtype=jnp.int32)

    fwd = jax.jit(functools.partial(gat_conv_forward, params=params))
    out = fwd(label_idx, features, neigh_idx, neigh_mask)
    out = jax.block_until_ready(out)

    assert out.shape == (N_LABELS, D_LBL), out.shape
    assert bool(jnp.all(jnp.isfinite(out)))

    ref = gat_conv_reference(label_idx, features, neigh_idx, neigh_mask, params)
    max_err = float(jnp.max(jnp.abs(out - ref)))
    assert max_err < 1e-1, f"max abs error vs f32 reference: {max_err}"
    print("KERNEL_OK")
</pallas_src>

<mosaic_0001>
module attributes {stable_mosaic.version = 11 : i64} {
  func.func @_project_kernel(%arg0: i32, %arg1: memref<16x128xbf16, #tpu.memory_space<vmem>>, %arg2: memref<128x128xbf16, #tpu.memory_space<vmem>>, %arg3: memref<1x128xf32, #tpu.memory_space<vmem>>, %arg4: memref<16x128xbf16, #tpu.memory_space<vmem>>) attributes {dimension_semantics = [#tpu.dimension_semantics<parallel>], iteration_bounds = array<i64: 2>, scalar_prefetch = 0 : i64, scratch_operands = 0 : i64, tpu.core_type = #tpu.core_type<tc>, window_params = [{transform_indices = @transform_0, window_bounds = array<i64: 16, 128>}, {pipeline_mode = #tpu.pipeline_mode<synchronous>, transform_indices = @transform_1, window_bounds = array<i64: 128, 128>}, {pipeline_mode = #tpu.pipeline_mode<synchronous>, transform_indices = @transform_2, window_bounds = array<i64: 1, 128>}, {transform_indices = @transform_3, window_bounds = array<i64: 16, 128>}]} {
    %c0 = arith.constant 0 : index
    %c0_0 = arith.constant 0 : index
    %0 = vector.load %arg1[%c0, %c0_0] : memref<16x128xbf16, #tpu.memory_space<vmem>>, vector<16x128xbf16>
    %c0_1 = arith.constant 0 : index
    %c0_2 = arith.constant 0 : index
    %1 = vector.load %arg2[%c0_1, %c0_2] : memref<128x128xbf16, #tpu.memory_space<vmem>>, vector<128x128xbf16>
    %cst = arith.constant dense<0.000000e+00> : vector<16x128xf32>
    %2 = tpu.matmul %0, %1, %cst {dimension_numbers = #tpu.dot_dimension_numbers<[1], [0], [0], [1], [0, 0, 1, 1], [], []>} : vector<16x128xbf16>, vector<128x128xbf16>, vector<16x128xf32> -> vector<16x128xf32>
    %c0_3 = arith.constant 0 : index
    %c0_4 = arith.constant 0 : index
    %3 = vector.load %arg3[%c0_3, %c0_4] : memref<1x128xf32, #tpu.memory_space<vmem>>, vector<1x128xf32>
    %4 = vector.broadcast %3 : vector<1x128xf32> to vector<16x128xf32>
    %5 = arith.addf %2, %4 : vector<16x128xf32>
    %6 = arith.truncf %5 : vector<16x128xf32> to vector<16x128xbf16>
    %c0_5 = arith.constant 0 : index
    %c0_6 = arith.constant 0 : index
    %7 = vector.load %arg4[%c0_5, %c0_6] : memref<16x128xbf16, #tpu.memory_space<vmem>>, vector<16x128xbf16>
    tpu.vector_store %arg4[%c0_5, %c0_6], %6 {strides = array<i32>} : memref<16x128xbf16, #tpu.memory_space<vmem>>, vector<16x128xbf16>,
    return
  }
  func.func @transform_0(%arg0: i32) -> (i32, i32) {
    %c0_i32 = arith.constant 0 : i32
    %c0_i32_0 = arith.constant 0 : i32
    return %arg0, %c0_i32 : i32, i32
  }
  func.func @transform_1(%arg0: i32) -> (i32, i32) {
    %c0_i32 = arith.constant 0 : i32
    %c0_i32_0 = arith.constant 0 : i32
    %c0_i32_1 = arith.constant 0 : i32
    return %c0_i32, %c0_i32_0 : i32, i32
  }
  func.func @transform_2(%arg0: i32) -> (i32, i32) {
    %c0_i32 = arith.constant 0 : i32
    %c0_i32_0 = arith.constant 0 : i32
    %c0_i32_1 = arith.constant 0 : i32
    return %c0_i32, %c0_i32_0 : i32, i32
  }
  func.func @transform_3(%arg0: i32) -> (i32, i32) {
    %c0_i32 = arith.constant 0 : i32
    %c0_i32_0 = arith.constant 0 : i32
    return %arg0, %c0_i32 : i32, i32
  }
}

module attributes {stable_mosaic.version = 11 : i64} {
  func.func @_gat_attn_kernel(%arg0: i32, %arg1: memref<16x8x128xbf16, #tpu.memory_space<vmem>>, %arg2: memref<16x128xbf16, #tpu.memory_space<vmem>>) attributes {dimension_semantics = [#tpu.dimension_semantics<parallel>], iteration_bounds = array<i64: 2>, scalar_prefetch = 0 : i64, scratch_operands = 0 : i64, tpu.core_type = #tpu.core_type<tc>, window_params = [{transform_indices = @transform_0, window_bounds = array<i64: 16, 8, 128>}, {transform_indices = @transform_1, window_bounds = array<i64: 16, 128>}]} {
    %c0 = arith.constant 0 : index
    %c0_0 = arith.constant 0 : index
    %c0_1 = arith.constant 0 : index
    %0 = vector.load %arg1[%c0, %c0_0, %c0_1] : memref<16x8x128xbf16, #tpu.memory_space<vmem>>, vector<16x8x128xbf16>
    %1 = arith.extf %0 : vector<16x8x128xbf16> to vector<16x8x128xf32>
    %2 = vector.extract_strided_slice %1 {offsets = [0, 0, 32], sizes = [16, 8, 1], strides = [1, 1, 1]} : vector<16x8x128xf32> to vector<16x8x1xf32>
    %3 = vector.shape_cast %2 : vector<16x8x1xf32> to vector<16x8xf32>
    %4 = vector.extract_strided_slice %3 {offsets = [0, 0], sizes = [16, 1], strides = [1, 1]} : vector<16x8xf32> to vector<16x1xf32>
    %5 = vector.extract_strided_slice %1 {offsets = [0, 0, 33], sizes = [16, 8, 1], strides = [1, 1, 1]} : vector<16x8x128xf32> to vector<16x8x1xf32>
    %6 = vector.shape_cast %5 : vector<16x8x1xf32> to vector<16x8xf32>
    %7 = vector.broadcast %4 : vector<16x1xf32> to vector<16x8xf32>
    %8 = arith.addf %7, %6 : vector<16x8xf32>
    %cst = arith.constant 0.000000e+00 : f32
    %9 = vector.broadcast %cst : f32 to vector<16x8xf32>
    %10 = arith.cmpf oge, %8, %9 : vector<16x8xf32>
    %cst_2 = arith.constant 2.000000e-01 : f32
    %11 = vector.broadcast %cst_2 : f32 to vector<16x8xf32>
    %12 = arith.mulf %11, %8 : vector<16x8xf32>
    %13 = arith.select %10, %8, %12 : vector<16x8xi1>, vector<16x8xf32>
    %cst_3 = arith.constant dense<0xFF800000> : vector<16xf32>
    %14 = vector.multi_reduction <maximumf>, %13, %cst_3 [1] : vector<16x8xf32> to vector<16xf32>
    %15 = vector.shape_cast %14 : vector<16xf32> to vector<16x1xf32>
    %16 = vector.broadcast %15 : vector<16x1xf32> to vector<16x8xf32>
    %17 = arith.subf %13, %16 : vector<16x8xf32>
    %18 = math.exp %17 : vector<16x8xf32>
    %cst_4 = arith.constant dense<0.000000e+00> : vector<16xf32>
    %19 = vector.multi_reduction <add>, %18, %cst_4 [1] : vector<16x8xf32> to vector<16xf32>
    %20 = vector.shape_cast %19 : vector<16xf32> to vector<16x1xf32>
    %21 = vector.broadcast %20 : vector<16x1xf32> to vector<16x8xf32>
    %22 = arith.divf %18, %21 : vector<16x8xf32>
    %23 = vector.shape_cast %22 : vector<16x8xf32> to vector<16x8x1xf32>
    %24 = vector.broadcast %23 : vector<16x8x1xf32> to vector<16x8x128xf32>
    %25 = arith.mulf %24, %1 : vector<16x8x128xf32>
    %cst_5 = arith.constant dense<0.000000e+00> : vector<16x128xf32>
    %26 = vector.multi_reduction <add>, %25, %cst_5 [1] : vector<16x8x128xf32> to vector<16x128xf32>
    %cst_6 = arith.constant 0.000000e+00 : f32
    %27 = vector.broadcast %cst_6 : f32 to vector<16x128xf32>
    %28 = arith.maximumf %26, %27 : vector<16x128xf32>
    %29 = arith.truncf %28 : vector<16x128xf32> to vector<16x128xbf16>
    %c0_7 = arith.constant 0 : index
    %c0_8 = arith.constant 0 : index
    %30 = vector.load %arg2[%c0_7, %c0_8] : memref<16x128xbf16, #tpu.memory_space<vmem>>, vector<16x128xbf16>
    tpu.vector_store %arg2[%c0_7, %c0_8], %29 {strides = array<i32>} : memref<16x128xbf16, #tpu.memory_space<vmem>>, vector<16x128xbf16>,
    return
  }
  func.func @transform_0(%arg0: i32) -> (i32, i32, i32) {
    %c0_i32 = arith.constant 0 : i32
    %c0_i32_0 = arith.constant 0 : i32
    %c0_i32_1 = arith.constant 0 : i32
    return %arg0, %c0_i32, %c0_i32_0 : i32, i32, i32
  }
  func.func @transform_1(%arg0: i32) -> (i32, i32) {
    %c0_i32 = arith.constant 0 : i32
    %c0_i32_0 = arith.constant 0 : i32
    return %arg0, %c0_i32 : i32, i32
  }
}

module attributes {stable_mosaic.version = 11 : i64} {
  func.func @_gat_attn_kernel(%arg0: i32, %arg1: memref<16x8x128xbf16, #tpu.memory_space<vmem>>, %arg2: memref<16x128xf32, #tpu.memory_space<vmem>>) attributes {dimension_semantics = [#tpu.dimension_semantics<parallel>], iteration_bounds = array<i64: 1>, scalar_prefetch = 0 : i64, scratch_operands = 0 : i64, tpu.core_type = #tpu.core_type<tc>, window_params = [{transform_indices = @transform_0, window_bounds = array<i64: 16, 8, 128>}, {transform_indices = @transform_1, window_bounds = array<i64: 16, 128>}]} {
    %c0 = arith.constant 0 : index
    %c0_0 = arith.constant 0 : index
    %c0_1 = arith.constant 0 : index
    %0 = vector.load %arg1[%c0, %c0_0, %c0_1] : memref<16x8x128xbf16, #tpu.memory_space<vmem>>, vector<16x8x128xbf16>
    %1 = arith.extf %0 : vector<16x8x128xbf16> to vector<16x8x128xf32>
    %2 = vector.extract_strided_slice %1 {offsets = [0, 0, 16], sizes = [16, 8, 1], strides = [1, 1, 1]} : vector<16x8x128xf32> to vector<16x8x1xf32>
    %3 = vector.shape_cast %2 : vector<16x8x1xf32> to vector<16x8xf32>
    %4 = vector.extract_strided_slice %3 {offsets = [0, 0], sizes = [16, 1], strides = [1, 1]} : vector<16x8xf32> to vector<16x1xf32>
    %5 = vector.extract_strided_slice %1 {offsets = [0, 0, 17], sizes = [16, 8, 1], strides = [1, 1, 1]} : vector<16x8x128xf32> to vector<16x8x1xf32>
    %6 = vector.shape_cast %5 : vector<16x8x1xf32> to vector<16x8xf32>
    %7 = vector.broadcast %4 : vector<16x1xf32> to vector<16x8xf32>
    %8 = arith.addf %7, %6 : vector<16x8xf32>
    %cst = arith.constant 0.000000e+00 : f32
    %9 = vector.broadcast %cst : f32 to vector<16x8xf32>
    %10 = arith.cmpf oge, %8, %9 : vector<16x8xf32>
    %cst_2 = arith.constant 2.000000e-01 : f32
    %11 = vector.broadcast %cst_2 : f32 to vector<16x8xf32>
    %12 = arith.mulf %11, %8 : vector<16x8xf32>
    %13 = arith.select %10, %8, %12 : vector<16x8xi1>, vector<16x8xf32>
    %cst_3 = arith.constant dense<0xFF800000> : vector<16xf32>
    %14 = vector.multi_reduction <maximumf>, %13, %cst_3 [1] : vector<16x8xf32> to vector<16xf32>
    %15 = vector.shape_cast %14 : vector<16xf32> to vector<16x1xf32>
    %16 = vector.broadcast %15 : vector<16x1xf32> to vector<16x8xf32>
    %17 = arith.subf %13, %16 : vector<16x8xf32>
    %18 = math.exp %17 : vector<16x8xf32>
    %cst_4 = arith.constant dense<0.000000e+00> : vector<16xf32>
    %19 = vector.multi_reduction <add>, %18, %cst_4 [1] : vector<16x8xf32> to vector<16xf32>
    %20 = vector.shape_cast %19 : vector<16xf32> to vector<16x1xf32>
    %21 = vector.broadcast %20 : vector<16x1xf32> to vector<16x8xf32>
    %22 = arith.divf %18, %21 : vector<16x8xf32>
    %23 = vector.shape_cast %22 : vector<16x8xf32> to vector<16x8x1xf32>
    %24 = vector.broadcast %23 : vector<16x8x1xf32> to vector<16x8x128xf32>
    %25 = arith.mulf %24, %1 : vector<16x8x128xf32>
    %cst_5 = arith.constant dense<0.000000e+00> : vector<16x128xf32>
    %26 = vector.multi_reduction <add>, %25, %cst_5 [1] : vector<16x8x128xf32> to vector<16x128xf32>
    %c0_6 = arith.constant 0 : index
    %c0_7 = arith.constant 0 : index
    %27 = vector.load %arg2[%c0_6, %c0_7] : memref<16x128xf32, #tpu.memory_space<vmem>>, vector<16x128xf32>
    tpu.vector_store %arg2[%c0_6, %c0_7], %26 {strides = array<i32>} : memref<16x128xf32, #tpu.memory_space<vmem>>, vector<16x128xf32>,
    return
  }
  func.func @transform_0(%arg0: i32) -> (i32, i32, i32) {
    %c0_i32 = arith.constant 0 : i32
    %c0_i32_0 = arith.constant 0 : i32
    %c0_i32_1 = arith.constant 0 : i32
    return %arg0, %c0_i32, %c0_i32_0 : i32, i32, i32
  }
  func.func @transform_1(%arg0: i32) -> (i32, i32) {
    %c0_i32 = arith.constant 0 : i32
    %c0_i32_0 = arith.constant 0 : i32
    return %arg0, %c0_i32 : i32, i32
  }
}

</mosaic_0001>

<llo_original>
// kernel: gat_conv_forward.4
$region0: #{gat_conv_forward.4}
  #allocation0 [shape = 'u32[]', space=smem, size = 0x4, offset = 0x4, fixed_abs, tag = 'smem constant byte address 0x4 - core index']
  #allocation1 [shape = 'u32[72,128]{1,0:T(1,128)}', space=vmem, size = 0x9000, scoped, tag = 'internal scratch']
  %s0 = inlined_call_operand.vmem [shape: bf16[32,128], index: 0, kind: input, shape index: {}]
  %s1 = inlined_call_operand.vmem [shape: bf16[128,128], index: 1, kind: input, shape index: {}]
  %s2 = inlined_call_operand.vmem [shape: f32[1,128], index: 2, kind: input, shape index: {}]
  %s3 = inlined_call_operand.vmem [shape: bf16[32,128], index: 3, kind: output, shape index: {}]
  %s4 = sld [smem:[#allocation0]]
  $region45: #{gat_conv_forward.4} parent=0
    _
  %s6 = ssub.s32 1, %s4
  %s7 = scalar_select 0, %s6, %s4
  loop: start=0, step=1, limit=4
  $region2: #{gat_conv_forward.4} parent=0 // loop_pre_header
    _
  $region3: #{gat_conv_forward.4} parent=0 // loop_header
    %s9 = sphi 0, %s13
    %p10 = scmp.ge.s32.totalorder %s9, 4
    %s19 = sphi 0, %s21
    %s22 = sphi 0, %s19
    %s23 = sphi 0, %s22
    %s39 = sphi 0, %s23
    %s43 = sphi 0, %s43
    %s45 = sphi 0, %s43
    %s46 = sphi 0, %s45
    %s60 = sphi 0, %s46
    %s64 = sphi 0, %s64
    %s66 = sphi 0, %s64
    %s67 = sphi 0, %s66
    %s81 = sphi 0, %s67
    %s87 = sphi 0, %s89
    %s90 = sphi 0, %s87
    %s91 = sphi 0, %s90
    %s107 = sphi 0, %s91
  $region4: #{gat_conv_forward.4} parent=0 // loop_header_branch
    %12 = sbr.rel (%p10) target = $region8
  $region5: #{gat_conv_forward.4} parent=0 // loop_body
    %s14 = ssub.s32 %s9, 1
    %s15 = ssub.s32 %s9, 2
    %s16 = sadd.s32 %s9, 1
    %s17 = ssub.s32 %s9, %s16
    %p18 = scmp.eq.s32.totalorder %s17, 0
    %s20 = sadd.s32 %s19, 1
    %s21 = scalar_select %p18, %s19, %s20
    %p24 = pneg %p18
    %p25 = scmp.eq.s32.totalorder %s9, 1
    %p26 = por %p24, %p25
    %p27 = scmp.ne.s32.totalorder %s19, %s22
    %p28 = scmp.eq.s32.totalorder %s9, 0
    %p29 = por %p27, %p28
    %p30 = scmp.ne.s32.totalorder %s19, %s22
    %p31 = scmp.eq.s32.totalorder %s14, 1
    %p32 = por %p30, %p31
    %p33 = scmp.ne.s32.totalorder %s22, %s23
    %p34 = scmp.eq.s32.totalorder %s14, 0
    %p35 = por %p33, %p34
    %p36 = scmp.ne.s32.totalorder %s22, %s23
    %p37 = scmp.eq.s32.totalorder %s15, 1
    %p38 = por %p36, %p37
    %p40 = scmp.ne.s32.totalorder %s23, %s39
    %p41 = scmp.eq.s32.totalorder %s15, 0
    %p42 = por %p40, %p41
    %s44 = sadd.s32 %s43, 1
    %p47 = scmp.eq.s32.totalorder %s9, 1
    %p48 = scmp.ne.s32.totalorder %s43, %s45
    %p49 = scmp.eq.s32.totalorder %s9, 0
    %p50 = por %p48, %p49
    %p51 = scmp.ne.s32.totalorder %s43, %s45
    %p52 = scmp.eq.s32.totalorder %s14, 1
    %p53 = por %p51, %p52
    %p54 = scmp.ne.s32.totalorder %s45, %s46
    %p55 = scmp.eq.s32.totalorder %s14, 0
    %p56 = por %p54, %p55
    %p57 = scmp.ne.s32.totalorder %s45, %s46
    %p58 = scmp.eq.s32.totalorder %s15, 1
    %p59 = por %p57, %p58
    %p61 = scmp.ne.s32.totalorder %s46, %s60
    %p62 = scmp.eq.s32.totalorder %s15, 0
    %p63 = por %p61, %p62
    %s65 = sadd.s32 %s64, 1
    %p68 = scmp.eq.s32.totalorder %s9, 1
    %p69 = scmp.ne.s32.totalorder %s64, %s66
    %p70 = scmp.eq.s32.totalorder %s9, 0
    %p71 = por %p69, %p70
    %p72 = scmp.ne.s32.totalorder %s64, %s66
    %p73 = scmp.eq.s32.totalorder %s14, 1
    %p74 = por %p72, %p73
    %p75 = scmp.ne.s32.totalorder %s66, %s67
    %p76 = scmp.eq.s32.totalorder %s14, 0
    %p77 = por %p75, %p76
    %p78 = scmp.ne.s32.totalorder %s66, %s67
    %p79 = scmp.eq.s32.totalorder %s15, 1
    %p80 = por %p78, %p79
    %p82 = scmp.ne.s32.totalorder %s67, %s81
    %p83 = scmp.eq.s32.totalorder %s15, 0
    %p84 = por %p82, %p83
    %s85 = ssub.s32 %s9, %s16
    %p86 = scmp.eq.s32.totalorder %s85, 0
    %s88 = sadd.s32 %s87, 1
    %s89 = scalar_select %p86, %s87, %s88
    %p92 = pneg %p86
    %p93 = scmp.eq.s32.totalorder %s9, 1
    %p94 = por %p92, %p93
    %p95 = scmp.ne.s32.totalorder %s87, %s90
    %p96 = scmp.eq.s32.totalorder %s9, 0
    %p97 = por %p95, %p96
    %p98 = scmp.ne.s32.totalorder %s87, %s90
    %p99 = scmp.eq.s32.totalorder %s14, 1
    %p100 = por %p98, %p99
    %p101 = scmp.ne.s32.totalorder %s90, %s91
    %p102 = scmp.eq.s32.totalorder %s14, 0
    %p103 = por %p101, %p102
    %p104 = scmp.ne.s32.totalorder %s90, %s91
    %p105 = scmp.eq.s32.totalorder %s15, 1
    %p106 = por %p104, %p105
    %p108 = scmp.ne.s32.totalorder %s91, %s107
    %p109 = scmp.eq.s32.totalorder %s15, 0
    %p110 = por %p108, %p109
    %p111 = scmp.le.s32.totalorder 1, %s9
    %p112 = scmp.lt.s32.totalorder %s9, 3
    %p113 = pnand %p111, %p112
    %p114 = pneg %p113
    // Predicated region
    $region9: #{gat_conv_forward.4} parent=5 // pred_check
      _
    $region10: #{gat_conv_forward.4} parent=5 // pred_check_branch
      %116 = sbr.rel (%p113) target = $region12
    $region11: #{gat_conv_forward.4} parent=5 // pred_region
      %s117 = ssub.s32 %s9, 1
      // Predicated region
      $region13: #{gat_conv_forward.4} parent=11 // pred_check
        %p118 = pneg %p56
      $region14: #{gat_conv_forward.4} parent=11 // pred_check_branch
        %120 = sbr.rel (%p118) target = $region16
      $region15: #{gat_conv_forward.4} parent=11 // pred_region
        _
      $region16: #{gat_conv_forward.4} parent=11 // pred_fallthru
        _
      // Predicated region
      $region17: #{gat_conv_forward.4} parent=11 // pred_check
        %p121 = pneg %p77
      $region18: #{gat_conv_forward.4} parent=11 // pred_check_branch
        %123 = sbr.rel (%p121) target = $region20
      $region19: #{gat_conv_forward.4} parent=11 // pred_region
        _
      $region20: #{gat_conv_forward.4} parent=11 // pred_fallthru
        _
    $region12: #{gat_conv_forward.4} parent=5 // pred_fallthru
      _
    %p124 = scmp.lt.s32.totalorder %s9, 2
    // Predicated region
    $region21: #{gat_conv_forward.4} parent=5 // pred_check
      %p125 = pneg %p124
    $region22: #{gat_conv_forward.4} parent=5 // pred_check_branch
      %127 = sbr.rel (%p125) target = $region24
    $region23: #{gat_conv_forward.4} parent=5 // pred_region
      // Predicated region
      $region25: #{gat_conv_forward.4} parent=23 // pred_check
        %p128 = pneg %p29
      $region26: #{gat_conv_forward.4} parent=23 // pred_check_branch
        %130 = sbr.rel (%p128) target = $region28
      $region27: #{gat_conv_forward.4} parent=23 // pred_region
        %s131 = smul.u32 2, %s9
        %p132 = scmp.lt.s32.totalorder %s131, 3
        %s133 = scalar_select %p132, %s131, 3
        %s134 = smul.addr %s133, 4
        %s135 = scalar_lea.vmem %s0, %s134
        %s136 = smul.u32 2, %s9
      $region28: #{gat_conv_forward.4} parent=23 // pred_fallthru
        _
    $region24: #{gat_conv_forward.4} parent=5 // pred_fallthru
      _
    %p137 = scmp.le.s32.totalorder 1, %s9
    %p138 = scmp.lt.s32.totalorder %s9, 3
    %p139 = pnand %p137, %p138
    %p140 = pneg %p139
    // Predicated region
    $region29: #{gat_conv_forward.4} parent=5 // pred_check
      _
    $region30: #{gat_conv_forward.4} parent=5 // pred_check_branch
      %142 = sbr.rel (%p139) target = $region32
    $region31: #{gat_conv_forward.4} parent=5 // pred_region
      %s143 = ssub.s32 %s9, 1
      %s144 = smul.u32 2, %s14
      %p145 = scmp.lt.s32.totalorder %s144, 3
      %s146 = scalar_select %p145, %s144, 3
      %s147 = smul.addr %s146, 4
      %s148 = scalar_lea.vmem %s0, %s147
      %p149 = pneg %p35
      %p150 = pneg %p32
      %p151 = pneg %p56
      %p152 = pneg %p53
      %p153 = pneg %p77
      %p154 = pneg %p74
      %p155 = pneg %p103
      %p156 = pneg %p100
      %s157 = smul.u32 2, %s14
      %p158 = scmp.lt.s32.totalorder %s157, 3
      %s159 = scalar_select %p158, %s157, 3
      %s160 = smul.addr %s159, 4
      %s161 = scalar_lea.vmem %s3, %s160
      %s162 = smul.u32 2, %s14
      %p163 = scmp.lt.s32.totalorder %s162, 3
      %s164 = scalar_select %p163, %s162, 3
      %s165 = smul.addr %s164, 4
      %s166 = scalar_lea.vmem %s0, %s165
      %s167 = smul.u32 2, %s14
      %s168 = smul.u32 2, %s14
      %p169 = scmp.lt.s32.totalorder %s168, 3
      %s170 = scalar_select %p169, %s168, 3
      %s171 = smul.addr %s170, 4
      %s172 = scalar_lea.vmem %s3, %s171
      %s173 = smul.u32 2, %s14
      %v174 = vld [vmem:[%s166] sm:$0xf]
      %v175 = vld [vmem:[%s166 + $0x4] sm:$0xf]
      %v176 = vld [vmem:[%s1] sm:$0xf]
      %v177 = vld [vmem:[%s1 + $0x4] sm:$0xf]
      %v178 = vld [vmem:[%s1 + $0x8] sm:$0xf]
      %v179 = vld [vmem:[%s1 + $0xc] sm:$0xf]
      %v180 = vld [vmem:[%s1 + $0x10] sm:$0xf]
      %v181 = vld [vmem:[%s1 + $0x14] sm:$0xf]
      %v182 = vld [vmem:[%s1 + $0x18] sm:$0xf]
      %v183 = vld [vmem:[%s1 + $0x1c] sm:$0xf]
      %v184 = vld [vmem:[%s1 + $0x20] sm:$0xf]
      %v185 = vld [vmem:[%s1 + $0x24] sm:$0xf]
      %v186 = vld [vmem:[%s1 + $0x28] sm:$0xf]
      %v187 = vld [vmem:[%s1 + $0x2c] sm:$0xf]
      %v188 = vld [vmem:[%s1 + $0x30] sm:$0xf]
      %v189 = vld [vmem:[%s1 + $0x34] sm:$0xf]
      %v190 = vld [vmem:[%s1 + $0x38] sm:$0xf]
      %v191 = vld [vmem:[%s1 + $0x3c] sm:$0xf]
      %v192 = vld [vmem:[%s2] sm:$0x1]
      %v194 = vperm.slane %v192, 0
      %v198 = vunpack.c.l.b16 %v174
      %v199 = vunpack.c.l.b16 %v175
      %v200 = vpack.c.b16 %v199, %v198
      %v218 = vunpack.c.l.b16 %v176
      %v219 = vunpack.c.l.b16 %v177
      %v220 = vunpack.c.l.b16 %v178
      %v221 = vunpack.c.l.b16 %v179
      %v222 = vunpack.c.l.b16 %v180
      %v223 = vunpack.c.l.b16 %v181
      %v224 = vunpack.c.l.b16 %v182
      %v225 = vunpack.c.l.b16 %v183
      %v226 = vunpack.c.l.b16 %v184
      %v227 = vunpack.c.l.b16 %v185
      %v228 = vunpack.c.l.b16 %v186
      %v229 = vunpack.c.l.b16 %v187
      %v230 = vunpack.c.l.b16 %v188
      %v231 = vunpack.c.l.b16 %v189
      %v232 = vunpack.c.l.b16 %v190
      %v233 = vunpack.c.l.b16 %v191
      %v234 = vpack.c.b16 %v219, %v218
      %v235 = vpack.c.b16 %v221, %v220
      %v236 = vpack.c.b16 %v223, %v222
      %v237 = vpack.c.b16 %v225, %v224
      %v238 = vpack.c.b16 %v227, %v226
      %v239 = vpack.c.b16 %v229, %v228
      %v240 = vpack.c.b16 %v231, %v230
      %v241 = vpack.c.b16 %v233, %v232
      %250 = vmatpush.bf16.msra.mxu0 %v241
      %251 = vmatpush.bf16.msra.mxu0 %v240
      %252 = vmatpush.bf16.msra.mxu0 %v239
      %253 = vmatpush.bf16.msra.mxu0 %v238
      %254 = vmatpush.bf16.msra.mxu0 %v237
      %255 = vmatpush.bf16.msra.mxu0 %v236
      %256 = vmatpush.bf16.msra.mxu0 %v235
      %257 = vmatpush.bf16.msra.mxu0 %v234
      %258 = vmatmul.bf16.gmra.mxu0 %v200
      %v259 = vpop.f32.mrf.mxu0
      %v260 = vadd.f32 %v194, %v259
      %v261 = vpop.f32.mrf.mxu0
      %v262 = vadd.f32 %v194, %v261
      %263 = vdwg.mxu0
      %v264 = vpack.c.bf16 %v260, %v260
      %v265 = vpack.c.bf16 %v262, %v262
      %266 = vst [vmem:[%s172] sm:$0xf] %v264
      %267 = vst [vmem:[%s172 + $0x4] sm:$0xf] %v265
      %s268 = smul.u32 2, %s14
      %p269 = scmp.lt.s32.totalorder %s268, 3
      %s270 = scalar_select %p269, %s268, 3
      %s271 = smul.addr %s270, 4
      %s272 = scalar_lea.vmem %s3, %s271
      // Predicated region
      $region33: #{gat_conv_forward.4} parent=31 // pred_check
        %p273 = pneg %p100
      $region34: #{gat_conv_forward.4} parent=31 // pred_check_branch
        %275 = sbr.rel (%p273) target = $region36
      $region35: #{gat_conv_forward.4} parent=31 // pred_region
        %s276 = smul.u32 2, %s14
      $region36: #{gat_conv_forward.4} parent=31 // pred_fallthru
        _
    $region32: #{gat_conv_forward.4} parent=5 // pred_fallthru
      _
    %p277 = scmp.le.s32.totalorder 2, %s9
    // Predicated region
    $region37: #{gat_conv_forward.4} parent=5 // pred_check
      %p278 = pneg %p277
    $region38: #{gat_conv_forward.4} parent=5 // pred_check_branch
      %280 = sbr.rel (%p278) target = $region40
    $region39: #{gat_conv_forward.4} parent=5 // pred_region
      %s281 = ssub.s32 %s9, 2
      // Predicated region
      $region41: #{gat_conv_forward.4} parent=39 // pred_check
        %p282 = pneg %p106
      $region42: #{gat_conv_forward.4} parent=39 // pred_check_branch
        %284 = sbr.rel (%p282) target = $region44
      $region43: #{gat_conv_forward.4} parent=39 // pred_region
        %s285 = smul.u32 2, %s15
        %p286 = scmp.lt.s32.totalorder %s285, 3
        %s287 = scalar_select %p286, %s285, 3
        %s288 = smul.addr %s287, 4
        %s289 = scalar_lea.vmem %s3, %s288
      $region44: #{gat_conv_forward.4} parent=39 // pred_fallthru
        _
    $region40: #{gat_conv_forward.4} parent=5 // pred_fallthru
      _
  $region6: #{gat_conv_forward.4} parent=0 // loop_footer
    %s13 = sadd.s32 1, %s9
  $region7: #{gat_conv_forward.4} parent=0 // loop_footer_branch
    %8 = sbr.rel target = $region3
  $region8: #{gat_conv_forward.4} parent=0 // loop_exit
    _

// kernel: gat_conv_forward.5
$region0: #{gat_conv_forward.5}
  #allocation0 [shape = 'u32[]', space=smem, size = 0x4, offset = 0x4, fixed_abs, tag = 'smem constant byte address 0x4 - core index']
  #allocation1 [shape = 'u32[72,128]{1,0:T(1,128)}', space=vmem, size = 0x9000, scoped, tag = 'internal scratch']
  %s0 = inlined_call_operand.vmem [shape: bf16[32,8,128], index: 0, kind: input, shape index: {}]
  %s1 = inlined_call_operand.vmem [shape: bf16[32,128], index: 1, kind: output, shape index: {}]
  %s2 = sld [smem:[#allocation0]]
  $region37: #{gat_conv_forward.5} parent=0
    _
  %s4 = ssub.s32 1, %s2
  %s5 = scalar_select 0, %s4, %s2
  loop: start=0, step=1, limit=4
  $region2: #{gat_conv_forward.5} parent=0 // loop_pre_header
    _
  $region3: #{gat_conv_forward.5} parent=0 // loop_header
    %s7 = sphi 0, %s11
    %p8 = scmp.ge.s32.totalorder %s7, 4
    %s17 = sphi 0, %s19
    %s20 = sphi 0, %s17
    %s21 = sphi 0, %s20
    %s37 = sphi 0, %s21
    %s43 = sphi 0, %s45
    %s46 = sphi 0, %s43
    %s47 = sphi 0, %s46
    %s63 = sphi 0, %s47
  $region4: #{gat_conv_forward.5} parent=0 // loop_header_branch
    %10 = sbr.rel (%p8) target = $region8
  $region5: #{gat_conv_forward.5} parent=0 // loop_body
    %s12 = ssub.s32 %s7, 1
    %s13 = ssub.s32 %s7, 2
    %s14 = sadd.s32 %s7, 1
    %s15 = ssub.s32 %s7, %s14
    %p16 = scmp.eq.s32.totalorder %s15, 0
    %s18 = sadd.s32 %s17, 1
    %s19 = scalar_select %p16, %s17, %s18
    %p22 = pneg %p16
    %p23 = scmp.eq.s32.totalorder %s7, 1
    %p24 = por %p22, %p23
    %p25 = scmp.ne.s32.totalorder %s17, %s20
    %p26 = scmp.eq.s32.totalorder %s7, 0
    %p27 = por %p25, %p26
    %p28 = scmp.ne.s32.totalorder %s17, %s20
    %p29 = scmp.eq.s32.totalorder %s12, 1
    %p30 = por %p28, %p29
    %p31 = scmp.ne.s32.totalorder %s20, %s21
    %p32 = scmp.eq.s32.totalorder %s12, 0
    %p33 = por %p31, %p32
    %p34 = scmp.ne.s32.totalorder %s20, %s21
    %p35 = scmp.eq.s32.totalorder %s13, 1
    %p36 = por %p34, %p35
    %p38 = scmp.ne.s32.totalorder %s21, %s37
    %p39 = scmp.eq.s32.totalorder %s13, 0
    %p40 = por %p38, %p39
    %s41 = ssub.s32 %s7, %s14
    %p42 = scmp.eq.s32.totalorder %s41, 0
    %s44 = sadd.s32 %s43, 1
    %s45 = scalar_select %p42, %s43, %s44
    %p48 = pneg %p42
    %p49 = scmp.eq.s32.totalorder %s7, 1
    %p50 = por %p48, %p49
    %p51 = scmp.ne.s32.totalorder %s43, %s46
    %p52 = scmp.eq.s32.totalorder %s7, 0
    %p53 = por %p51, %p52
    %p54 = scmp.ne.s32.totalorder %s43, %s46
    %p55 = scmp.eq.s32.totalorder %s12, 1
    %p56 = por %p54, %p55
    %p57 = scmp.ne.s32.totalorder %s46, %s47
    %p58 = scmp.eq.s32.totalorder %s12, 0
    %p59 = por %p57, %p58
    %p60 = scmp.ne.s32.totalorder %s46, %s47
    %p61 = scmp.eq.s32.totalorder %s13, 1
    %p62 = por %p60, %p61
    %p64 = scmp.ne.s32.totalorder %s47, %s63
    %p65 = scmp.eq.s32.totalorder %s13, 0
    %p66 = por %p64, %p65
    %p67 = scmp.le.s32.totalorder 1, %s7
    %p68 = scmp.lt.s32.totalorder %s7, 3
    %p69 = pnand %p67, %p68
    %p70 = pneg %p69
    // Predicated region
    $region9: #{gat_conv_forward.5} parent=5 // pred_check
      _
    $region10: #{gat_conv_forward.5} parent=5 // pred_check_branch
      %72 = sbr.rel (%p69) target = $region12
    $region11: #{gat_conv_forward.5} parent=5 // pred_region
      %s73 = ssub.s32 %s7, 1
    $region12: #{gat_conv_forward.5} parent=5 // pred_fallthru
      _
    %p74 = scmp.lt.s32.totalorder %s7, 2
    // Predicated region
    $region13: #{gat_conv_forward.5} parent=5 // pred_check
      %p75 = pneg %p74
    $region14: #{gat_conv_forward.5} parent=5 // pred_check_branch
      %77 = sbr.rel (%p75) target = $region16
    $region15: #{gat_conv_forward.5} parent=5 // pred_region
      // Predicated region
      $region17: #{gat_conv_forward.5} parent=15 // pred_check
        %p78 = pneg %p27
      $region18: #{gat_conv_forward.5} parent=15 // pred_check_branch
        %80 = sbr.rel (%p78) target = $region20
      $region19: #{gat_conv_forward.5} parent=15 // pred_region
        %s81 = smul.u32 16, %s7
        %p82 = scmp.lt.s32.totalorder %s81, 31
        %s83 = scalar_select %p82, %s81, 31
        %s84 = smul.addr %s83, 4
        %s85 = scalar_lea.vmem %s0, %s84
        %s86 = smul.u32 16, %s7
      $region20: #{gat_conv_forward.5} parent=15 // pred_fallthru
        _
    $region16: #{gat_conv_forward.5} parent=5 // pred_fallthru
      _
    %p87 = scmp.le.s32.totalorder 1, %s7
    %p88 = scmp.lt.s32.totalorder %s7, 3
    %p89 = pnand %p87, %p88
    %p90 = pneg %p89
    // Predicated region
    $region21: #{gat_conv_forward.5} parent=5 // pred_check
      _
    $region22: #{gat_conv_forward.5} parent=5 // pred_check_branch
      %92 = sbr.rel (%p89) target = $region24
    $region23: #{gat_conv_forward.5} parent=5 // pred_region
      %s93 = ssub.s32 %s7, 1
      %s94 = smul.u32 16, %s12
      %p95 = scmp.lt.s32.totalorder %s94, 31
      %s96 = scalar_select %p95, %s94, 31
      %s97 = smul.addr %s96, 4
      %s98 = scalar_lea.vmem %s0, %s97
      %p99 = pneg %p33
      %p100 = pneg %p30
      %p101 = pneg %p59
      %p102 = pneg %p56
      %s103 = smul.u32 2, %s12
      %p104 = scmp.lt.s32.totalorder %s103, 3
      %s105 = scalar_select %p104, %s103, 3
      %s106 = smul.addr %s105, 4
      %s107 = scalar_lea.vmem %s1, %s106
      %s108 = smul.u32 16, %s12
      %p109 = scmp.lt.s32.totalorder %s108, 31
      %s110 = scalar_select %p109, %s108, 31
      %s111 = smul.addr %s110, 4
      %s112 = scalar_lea.vmem %s0, %s111
      %s113 = smul.u32 16, %s12
      %s114 = smul.u32 2, %s12
      %p115 = scmp.lt.s32.totalorder %s114, 3
      %s116 = scalar_select %p115, %s114, 3
      %s117 = smul.addr %s116, 4
      %s118 = scalar_lea.vmem %s1, %s117
      %s119 = smul.u32 2, %s12
      %v120 = vld [vmem:[%s112] sm:$0xf]
      %v121 = vld [vmem:[%s112 + $0x4] sm:$0xf]
      %v122 = vld [vmem:[%s112 + $0x8] sm:$0xf]
      %v123 = vld [vmem:[%s112 + $0xc] sm:$0xf]
      %v124 = vld [vmem:[%s112 + $0x10] sm:$0xf]
      %v125 = vld [vmem:[%s112 + $0x14] sm:$0xf]
      %v126 = vld [vmem:[%s112 + $0x18] sm:$0xf]
      %v127 = vld [vmem:[%s112 + $0x1c] sm:$0xf]
      %v128 = vld [vmem:[%s112 + $0x20] sm:$0xf]
      %v129 = vld [vmem:[%s112 + $0x24] sm:$0xf]
      %v130 = vld [vmem:[%s112 + $0x28] sm:$0xf]
      %v131 = vld [vmem:[%s112 + $0x2c] sm:$0xf]
      %v132 = vld [vmem:[%s112 + $0x30] sm:$0xf]
      %v133 = vld [vmem:[%s112 + $0x34] sm:$0xf]
      %v134 = vld [vmem:[%s112 + $0x38] sm:$0xf]
      %v135 = vld [vmem:[%s112 + $0x3c] sm:$0xf]
      %v136 = vunpack.c.l.bf16 %v120
      %v137 = vunpack.c.l.bf16 %v121
      %v138 = vunpack.c.l.bf16 %v122
      %v139 = vunpack.c.l.bf16 %v123
      %v140 = vunpack.c.l.bf16 %v124
      %v141 = vunpack.c.l.bf16 %v125
      %v142 = vunpack.c.l.bf16 %v126
      %v143 = vunpack.c.l.bf16 %v127
      %v144 = vunpack.c.l.bf16 %v128
      %v145 = vunpack.c.l.bf16 %v129
      %v146 = vunpack.c.l.bf16 %v130
      %v147 = vunpack.c.l.bf16 %v131
      %v148 = vunpack.c.l.bf16 %v132
      %v149 = vunpack.c.l.bf16 %v133
      %v150 = vunpack.c.l.bf16 %v134
      %v151 = vunpack.c.l.bf16 %v135
      %v152 = vperm.slane %v136, 0
      %v153 = vperm.slane %v137, 0
      %v154 = vperm.slane %v138, 0
      %v155 = vperm.slane %v139, 0
      %v156 = vperm.slane %v140, 0
      %v157 = vperm.slane %v141, 0
      %v158 = vperm.slane %v142, 0
      %v159 = vperm.slane %v143, 0
      %v160 = vperm.slane %v144, 0
      %v161 = vperm.slane %v145, 0
      %v162 = vperm.slane %v146, 0
      %v163 = vperm.slane %v147, 0
      %v164 = vperm.slane %v148, 0
      %v165 = vperm.slane %v149, 0
      %v166 = vperm.slane %v150, 0
      %v167 = vperm.slane %v151, 0
      %184 = vrot.lane.b32.xlu0 %v136, 127
      %v185 = vpop.permute.xlu0 %184
      %186 = vrot.lane.b32.xlu0 %v137, 127
      %v187 = vpop.permute.xlu0 %186
      %188 = vrot.lane.b32.xlu0 %v138, 127
      %v189 = vpop.permute.xlu0 %188
      %190 = vrot.lane.b32.xlu0 %v139, 127
      %v191 = vpop.permute.xlu0 %190
      %192 = vrot.lane.b32.xlu0 %v140, 127
      %v193 = vpop.permute.xlu0 %192
      %194 = vrot.lane.b32.xlu0 %v141, 127
      %v195 = vpop.permute.xlu0 %194
      %196 = vrot.lane.b32.xlu0 %v142, 127
      %v197 = vpop.permute.xlu0 %196
      %198 = vrot.lane.b32.xlu0 %v143, 127
      %v199 = vpop.permute.xlu0 %198
      %200 = vrot.lane.b32.xlu0 %v144, 127
      %v201 = vpop.permute.xlu0 %200
      %202 = vrot.lane.b32.xlu0 %v145, 127
      %v203 = vpop.permute.xlu0 %202
      %204 = vrot.lane.b32.xlu0 %v146, 127
      %v205 = vpop.permute.xlu0 %204
      %206 = vrot.lane.b32.xlu0 %v147, 127
      %v207 = vpop.permute.xlu0 %206
      %208 = vrot.lane.b32.xlu0 %v148, 127
      %v209 = vpop.permute.xlu0 %208
      %210 = vrot.lane.b32.xlu0 %v149, 127
      %v211 = vpop.permute.xlu0 %210
      %212 = vrot.lane.b32.xlu0 %v150, 127
      %v213 = vpop.permute.xlu0 %212
      %214 = vrot.lane.b32.xlu0 %v151, 127
      %v215 = vpop.permute.xlu0 %214
      %v232 = vadd.f32 %v152, %v185
      %v233 = vadd.f32 %v153, %v187
      %v234 = vadd.f32 %v154, %v189
      %v235 = vadd.f32 %v155, %v191
      %v236 = vadd.f32 %v156, %v193
      %v237 = vadd.f32 %v157, %v195
      %v238 = vadd.f32 %v158, %v197
      %v239 = vadd.f32 %v159, %v199
      %v240 = vadd.f32 %v160, %v201
      %v241 = vadd.f32 %v161, %v203
      %v242 = vadd.f32 %v162, %v205
      %v243 = vadd.f32 %v163, %v207
      %v244 = vadd.f32 %v164, %v209
      %v245 = vadd.f32 %v165, %v211
      %v246 = vadd.f32 %v166, %v213
      %v247 = vadd.f32 %v167, %v215
      %vm248 = vcmp.ge.f32.partialorder %v232, 0.0
      %vm249 = vcmp.ge.f32.partialorder %v233, 0.0
      %vm250 = vcmp.ge.f32.partialorder %v234, 0.0
      %vm251 = vcmp.ge.f32.partialorder %v235, 0.0
      %vm252 = vcmp.ge.f32.partialorder %v236, 0.0
      %vm253 = vcmp.ge.f32.partialorder %v237, 0.0
      %vm254 = vcmp.ge.f32.partialorder %v238, 0.0
      %vm255 = vcmp.ge.f32.partialorder %v239, 0.0
      %vm256 = vcmp.ge.f32.partialorder %v240, 0.0
      %vm257 = vcmp.ge.f32.partialorder %v241, 0.0
      %vm258 = vcmp.ge.f32.partialorder %v242, 0.0
      %vm259 = vcmp.ge.f32.partialorder %v243, 0.0
      %vm260 = vcmp.ge.f32.partialorder %v244, 0.0
      %vm261 = vcmp.ge.f32.partialorder %v245, 0.0
      %vm262 = vcmp.ge.f32.partialorder %v246, 0.0
      %vm263 = vcmp.ge.f32.partialorder %v247, 0.0
      %v264 = vmul.f32 %v232, 0.2
      %v265 = vmul.f32 %v233, 0.2
      %v266 = vmul.f32 %v234, 0.2
      %v267 = vmul.f32 %v235, 0.2
      %v268 = vmul.f32 %v236, 0.2
      %v269 = vmul.f32 %v237, 0.2
      %v270 = vmul.f32 %v238, 0.2
      %v271 = vmul.f32 %v239, 0.2
      %v272 = vmul.f32 %v240, 0.2
      %v273 = vmul.f32 %v241, 0.2
      %v274 = vmul.f32 %v242, 0.2
      %v275 = vmul.f32 %v243, 0.2
      %v276 = vmul.f32 %v244, 0.2
      %v277 = vmul.f32 %v245, 0.2
      %v278 = vmul.f32 %v246, 0.2
      %v279 = vmul.f32 %v247, 0.2
      %v280 = vsel %vm248, %v232, %v264
      %v281 = vsel %vm249, %v233, %v265
      %v282 = vsel %vm250, %v234, %v266
      %v283 = vsel %vm251, %v235, %v267
      %v284 = vsel %vm252, %v236, %v268
      %v285 = vsel %vm253, %v237, %v269
      %v286 = vsel %vm254, %v238, %v270
      %v287 = vsel %vm255, %v239, %v271
      %v288 = vsel %vm256, %v240, %v272
      %v289 = vsel %vm257, %v241, %v273
      %v290 = vsel %vm258, %v242, %v274
      %v291 = vsel %vm259, %v243, %v275
      %v292 = vsel %vm260, %v244, %v276
      %v293 = vsel %vm261, %v245, %v277
      %v294 = vsel %vm262, %v246, %v278
      %v295 = vsel %vm263, %v247, %v279
      %312 = vset.pattern.permute.xlu0 32
      %313 = vperm.xlu0 %312, %v280
      %v314 = vpop.permute.xlu0 %313
      %315 = vset.pattern.permute.xlu0 32
      %316 = vperm.xlu0 %315, %v281
      %v317 = vpop.permute.xlu0 %316
      %318 = vset.pattern.permute.xlu0 32
      %319 = vperm.xlu0 %318, %v282
      %v320 = vpop.permute.xlu0 %319
      %321 = vset.pattern.permute.xlu0 32
      %322 = vperm.xlu0 %321, %v283
      %v323 = vpop.permute.xlu0 %322
      %324 = vset.pattern.permute.xlu0 32
      %325 = vperm.xlu0 %324, %v284
      %v326 = vpop.permute.xlu0 %325
      %327 = vset.pattern.permute.xlu0 32
      %328 = vperm.xlu0 %327, %v285
      %v329 = vpop.permute.xlu0 %328
      %330 = vset.pattern.permute.xlu0 32
      %331 = vperm.xlu0 %330, %v286
      %v332 = vpop.permute.xlu0 %331
      %333 = vset.pattern.permute.xlu0 32
      %334 = vperm.xlu0 %333, %v287
      %v335 = vpop.permute.xlu0 %334
      %336 = vset.pattern.permute.xlu0 32
      %337 = vperm.xlu0 %336, %v288
      %v338 = vpop.permute.xlu0 %337
      %339 = vset.pattern.permute.xlu0 32
      %340 = vperm.xlu0 %339, %v289
      %v341 = vpop.permute.xlu0 %340
      %342 = vset.pattern.permute.xlu0 32
      %343 = vperm.xlu0 %342, %v290
      %v344 = vpop.permute.xlu0 %343
      %345 = vset.pattern.permute.xlu0 32
      %346 = vperm.xlu0 %345, %v291
      %v347 = vpop.permute.xlu0 %346
      %348 = vset.pattern.permute.xlu0 32
      %349 = vperm.xlu0 %348, %v292
      %v350 = vpop.permute.xlu0 %349
      %351 = vset.pattern.permute.xlu0 32
      %352 = vperm.xlu0 %351, %v293
      %v353 = vpop.permute.xlu0 %352
      %354 = vset.pattern.permute.xlu0 32
      %355 = vperm.xlu0 %354, %v294
      %v356 = vpop.permute.xlu0 %355
      %357 = vset.pattern.permute.xlu0 32
      %358 = vperm.xlu0 %357, %v295
      %v359 = vpop.permute.xlu0 %358
      %v360 = vlaneseq
      %v361 = vand.u32 %v360, 127
      %v362 = vperm.slane %v314, %v361
      %v363 = vperm.slane %v317, %v361
      %v364 = vperm.slane %v320, %v361
      %v365 = vperm.slane %v323, %v361
      %v366 = vperm.slane %v326, %v361
      %v367 = vperm.slane %v329, %v361
      %v368 = vperm.slane %v332, %v361
      %v369 = vperm.slane %v335, %v361
      %v370 = vperm.slane %v338, %v361
      %v371 = vperm.slane %v341, %v361
      %v372 = vperm.slane %v344, %v361
      %v373 = vperm.slane %v347, %v361
      %v374 = vperm.slane %v350, %v361
      %v375 = vperm.slane %v353, %v361
      %v376 = vperm.slane %v356, %v361
      %v377 = vperm.slane %v359, %v361
      %vm378 = vcmask 1041409
      %v379 = vsel %vm378, %v363, %v362
      %vm380 = vcmask 1042434
      %v381 = vsel %vm380, %v364, %v379
      %vm382 = vcmask 1043459
      %v383 = vsel %vm382, %v365, %v381
      %vm384 = vcmask 1044484
      %v385 = vsel %vm384, %v366, %v383
      %vm386 = vcmask 1045509
      %v387 = vsel %vm386, %v367, %v385
      %vm388 = vcmask 1046534
      %v389 = vsel %vm388, %v368, %v387
      %vm390 = vcmask 1047559
      %v391 = vsel %vm390, %v369, %v389
      %v392 = vsel %vm378, %v371, %v370
      %v393 = vsel %vm380, %v372, %v392
      %v394 = vsel %vm382, %v373, %v393
      %v395 = vsel %vm384, %v374, %v394
      %v396 = vsel %vm386, %v375, %v395
      %v397 = vsel %vm388, %v376, %v396
      %v398 = vsel %vm390, %v377, %v397
      %vm401 = vcmask 64512
      %v402 = vsel %vm401, %v391, -inf
      %403 = vmax.xlane.f32.xlu0 %v402
      %v404 = vpop.xlane.xlu0 %403
      %v405 = vsel %vm401, %v398, -inf
      %406 = vmax.xlane.f32.xlu0 %v405
      %v407 = vpop.xlane.xlu0 %406
      %v410 = vperm.slane %v404, 0
      %v411 = vperm.slane %v404, 1
      %v412 = vperm.slane %v404, 2
      %v413 = vperm.slane %v404, 3
      %v414 = vperm.slane %v404, 4
      %v415 = vperm.slane %v404, 5
      %v416 = vperm.slane %v404, 6
      %v417 = vperm.slane %v404, 7
      %v418 = vperm.slane %v407, 0
      %v419 = vperm.slane %v407, 1
      %v420 = vperm.slane %v407, 2
      %v421 = vperm.slane %v407, 3
      %v422 = vperm.slane %v407, 4
      %v423 = vperm.slane %v407, 5
      %v424 = vperm.slane %v407, 6
      %v425 = vperm.slane %v407, 7
      %v442 = vsub.f32 %v280, %v410
      %v443 = vsub.f32 %v281, %v411
      %v444 = vsub.f32 %v282, %v412
      %v445 = vsub.f32 %v283, %v413
      %v446 = vsub.f32 %v284, %v414
      %v447 = vsub.f32 %v285, %v415
      %v448 = vsub.f32 %v286, %v416
      %v449 = vsub.f32 %v287, %v417
      %v450 = vsub.f32 %v288, %v418
      %v451 = vsub.f32 %v289, %v419
      %v452 = vsub.f32 %v290, %v420
      %v453 = vsub.f32 %v291, %v421
      %v454 = vsub.f32 %v292, %v422
      %v455 = vsub.f32 %v293, %v423
      %v456 = vsub.f32 %v294, %v424
      %v457 = vsub.f32 %v295, %v425
      %v458 = vmul.f32 %v442, 1.442695
      %v459 = vpow.pop %v458
      %v460 = vmul.f32 %v443, 1.442695
      %v461 = vpow.pop %v460
      %v462 = vmul.f32 %v444, 1.442695
      %v463 = vpow.pop %v462
      %v464 = vmul.f32 %v445, 1.442695
      %v465 = vpow.pop %v464
      %v466 = vmul.f32 %v446, 1.442695
      %v467 = vpow.pop %v466
      %v468 = vmul.f32 %v447, 1.442695
      %v469 = vpow.pop %v468
      %v470 = vmul.f32 %v448, 1.442695
      %v471 = vpow.pop %v470
      %v472 = vmul.f32 %v449, 1.442695
      %v473 = vpow.pop %v472
      %v474 = vmul.f32 %v450, 1.442695
      %v475 = vpow.pop %v474
      %v476 = vmul.f32 %v451, 1.442695
      %v477 = vpow.pop %v476
      %v478 = vmul.f32 %v452, 1.442695
      %v479 = vpow.pop %v478
      %v480 = vmul.f32 %v453, 1.442695
      %v481 = vpow.pop %v480
      %v482 = vmul.f32 %v454, 1.442695
      %v483 = vpow.pop %v482
      %v484 = vmul.f32 %v455, 1.442695
      %v485 = vpow.pop %v484
      %v486 = vmul.f32 %v456, 1.442695
      %v487 = vpow.pop %v486
      %v488 = vmul.f32 %v457, 1.442695
      %v489 = vpow.pop %v488
      %506 = vset.pattern.permute.xlu0 32
      %507 = vperm.xlu0 %506, %v459
      %v508 = vpop.permute.xlu0 %507
      %509 = vset.pattern.permute.xlu0 32
      %510 = vperm.xlu0 %509, %v461
      %v511 = vpop.permute.xlu0 %510
      %512 = vset.pattern.permute.xlu0 32
      %513 = vperm.xlu0 %512, %v463
      %v514 = vpop.permute.xlu0 %513
      %515 = vset.pattern.permute.xlu0 32
      %516 = vperm.xlu0 %515, %v465
      %v517 = vpop.permute.xlu0 %516
      %518 = vset.pattern.permute.xlu0 32
      %519 = vperm.xlu0 %518, %v467
      %v520 = vpop.permute.xlu0 %519
      %521 = vset.pattern.permute.xlu0 32
      %522 = vperm.xlu0 %521, %v469
      %v523 = vpop.permute.xlu0 %522
      %524 = vset.pattern.permute.xlu0 32
      %525 = vperm.xlu0 %524, %v471
      %v526 = vpop.permute.xlu0 %525
      %527 = vset.pattern.permute.xlu0 32
      %528 = vperm.xlu0 %527, %v473
      %v529 = vpop.permute.xlu0 %528
      %530 = vset.pattern.permute.xlu0 32
      %531 = vperm.xlu0 %530, %v475
      %v532 = vpop.permute.xlu0 %531
      %533 = vset.pattern.permute.xlu0 32
      %534 = vperm.xlu0 %533, %v477
      %v535 = vpop.permute.xlu0 %534
      %536 = vset.pattern.permute.xlu0 32
      %537 = vperm.xlu0 %536, %v479
      %v538 = vpop.permute.xlu0 %537
      %539 = vset.pattern.permute.xlu0 32
      %540 = vperm.xlu0 %539, %v481
      %v541 = vpop.permute.xlu0 %540
      %542 = vset.pattern.permute.xlu0 32
      %543 = vperm.xlu0 %542, %v483
      %v544 = vpop.permute.xlu0 %543
      %545 = vset.pattern.permute.xlu0 32
      %546 = vperm.xlu0 %545, %v485
      %v547 = vpop.permute.xlu0 %546
      %548 = vset.pattern.permute.xlu0 32
      %549 = vperm.xlu0 %548, %v487
      %v550 = vpop.permute.xlu0 %549
      %551 = vset.pattern.permute.xlu0 32
      %552 = vperm.xlu0 %551, %v489
      %v553 = vpop.permute.xlu0 %552
      %v554 = vperm.slane %v508, %v361
      %v555 = vperm.slane %v511, %v361
      %v556 = vperm.slane %v514, %v361
      %v557 = vperm.slane %v517, %v361
      %v558 = vperm.slane %v520, %v361
      %v559 = vperm.slane %v523, %v361
      %v560 = vperm.slane %v526, %v361
      %v561 = vperm.slane %v529, %v361
      %v562 = vperm.slane %v532, %v361
      %v563 = vperm.slane %v535, %v361
      %v564 = vperm.slane %v538, %v361
      %v565 = vperm.slane %v541, %v361
      %v566 = vperm.slane %v544, %v361
      %v567 = vperm.slane %v547, %v361
      %v568 = vperm.slane %v550, %v361
      %v569 = vperm.slane %v553, %v361
      %v570 = vsel %vm378, %v555, %v554
      %v571 = vsel %vm380, %v556, %v570
      %v572 = vsel %vm382, %v557, %v571
      %v573 = vsel %vm384, %v558, %v572
      %v574 = vsel %vm386, %v559, %v573
      %v575 = vsel %vm388, %v560, %v574
      %v576 = vsel %vm390, %v561, %v575
      %v577 = vsel %vm378, %v563, %v562
      %v578 = vsel %vm380, %v564, %v577
      %v579 = vsel %vm382, %v565, %v578
      %v580 = vsel %vm384, %v566, %v579
      %v581 = vsel %vm386, %v567, %v580
      %v582 = vsel %vm388, %v568, %v581
      %v583 = vsel %vm390, %v569, %v582
      %v586 = vsel %vm401, %v576, 0.0
      %587 = vadd.xlane.f32.xlu0 %v586
      %v588 = vpop.xlane.xlu0 %587
      %v589 = vsel %vm401, %v583, 0.0
      %590 = vadd.xlane.f32.xlu0 %v589
      %v591 = vpop.xlane.xlu0 %590
      %v594 = vperm.slane %v588, 0
      %v595 = vperm.slane %v588, 1
      %v596 = vperm.slane %v588, 2
      %v597 = vperm.slane %v588, 3
      %v598 = vperm.slane %v588, 4
      %v599 = vperm.slane %v588, 5
      %v600 = vperm.slane %v588, 6
      %v601 = vperm.slane %v588, 7
      %v602 = vperm.slane %v591, 0
      %v603 = vperm.slane %v591, 1
      %v604 = vperm.slane %v591, 2
      %v605 = vperm.slane %v591, 3
      %v606 = vperm.slane %v591, 4
      %v607 = vperm.slane %v591, 5
      %v608 = vperm.slane %v591, 6
      %v609 = vperm.slane %v591, 7
      %v626 = vrcp.pop %v594
      %v627 = vmul.f32 %v594, %v626
      %v628 = vsub.f32 1.0, %v627
      %v629 = vmul.f32 %v626, %v628
      %v630 = vadd.f32 %v626, %v629
      %vm631 = vweird.f32 %v594
      %vm632 = vweird.f32 %v626
      %vm633 = vmor %vm631, %vm632
      %v634 = vsel %vm633, %v626, %v630
      %v635 = vand.u32 2147483647, %v594
      %vm636 = vcmp.eq.f32.partialorder %v635, 8.507059e+37
      %v637 = vand.u32 %v594, 2147483648
      %v638 = vor.u32 1.1754944e-38, %v637
      %v639 = vsel %vm636, %v638, %v634
      %v640 = vmul.f32 %v459, %v639
      %v641 = vrcp.pop %v595
      %v642 = vmul.f32 %v595, %v641
      %v643 = vsub.f32 1.0, %v642
      %v644 = vmul.f32 %v641, %v643
      %v645 = vadd.f32 %v641, %v644
      %vm646 = vweird.f32 %v595
      %vm647 = vweird.f32 %v641
      %vm648 = vmor %vm646, %vm647
      %v649 = vsel %vm648, %v641, %v645
      %v650 = vand.u32 2147483647, %v595
      %vm651 = vcmp.eq.f32.partialorder %v650, 8.507059e+37
      %v652 = vand.u32 %v595, 2147483648
      %v653 = vor.u32 1.1754944e-38, %v652
      %v654 = vsel %vm651, %v653, %v649
      %v655 = vmul.f32 %v461, %v654
      %v656 = vrcp.pop %v596
      %v657 = vmul.f32 %v596, %v656
      %v658 = vsub.f32 1.0, %v657
      %v659 = vmul.f32 %v656, %v658
      %v660 = vadd.f32 %v656, %v659
      %vm661 = vweird.f32 %v596
      %vm662 = vweird.f32 %v656
      %vm663 = vmor %vm661, %vm662
      %v664 = vsel %vm663, %v656, %v660
      %v665 = vand.u32 2147483647, %v596
      %vm666 = vcmp.eq.f32.partialorder %v665, 8.507059e+37
      %v667 = vand.u32 %v596, 2147483648
      %v668 = vor.u32 1.1754944e-38, %v667
      %v669 = vsel %vm666, %v668, %v664
      %v670 = vmul.f32 %v463, %v669
      %v671 = vrcp.pop %v597
      %v672 = vmul.f32 %v597, %v671
      %v673 = vsub.f32 1.0, %v672
      %v674 = vmul.f32 %v671, %v673
      %v675 = vadd.f32 %v671, %v674
      %vm676 = vweird.f32 %v597
      %vm677 = vweird.f32 %v671
      %vm678 = vmor %vm676, %vm677
      %v679 = vsel %vm678, %v671, %v675
      %v680 = vand.u32 2147483647, %v597
      %vm681 = vcmp.eq.f32.partialorder %v680, 8.507059e+37
      %v682 = vand.u32 %v597, 2147483648
      %v683 = vor.u32 1.1754944e-38, %v682
      %v684 = vsel %vm681, %v683, %v679
      %v685 = vmul.f32 %v465, %v684
      %v686 = vrcp.pop %v598
      %v687 = vmul.f32 %v598, %v686
      %v688 = vsub.f32 1.0, %v687
      %v689 = vmul.f32 %v686, %v688
      %v690 = vadd.f32 %v686, %v689
      %vm691 = vweird.f32 %v598
      %vm692 = vweird.f32 %v686
      %vm693 = vmor %vm691, %vm692
      %v694 = vsel %vm693, %v686, %v690
      %v695 = vand.u32 2147483647, %v598
      %vm696 = vcmp.eq.f32.partialorder %v695, 8.507059e+37
      %v697 = vand.u32 %v598, 2147483648
      %v698 = vor.u32 1.1754944e-38, %v697
      %v699 = vsel %vm696, %v698, %v694
      %v700 = vmul.f32 %v467, %v699
      %v701 = vrcp.pop %v599
      %v702 = vmul.f32 %v599, %v701
      %v703 = vsub.f32 1.0, %v702
      %v704 = vmul.f32 %v701, %v703
      %v705 = vadd.f32 %v701, %v704
      %vm706 = vweird.f32 %v599
      %vm707 = vweird.f32 %v701
      %vm708 = vmor %vm706, %vm707
      %v709 = vsel %vm708, %v701, %v705
      %v710 = vand.u32 2147483647, %v599
      %vm711 = vcmp.eq.f32.partialorder %v710, 8.507059e+37
      %v712 = vand.u32 %v599, 2147483648
      %v713 = vor.u32 1.1754944e-38, %v712
      %v714 = vsel %vm711, %v713, %v709
      %v715 = vmul.f32 %v469, %v714
      %v716 = vrcp.pop %v600
      %v717 = vmul.f32 %v600, %v716
      %v718 = vsub.f32 1.0, %v717
      %v719 = vmul.f32 %v716, %v718
      %v720 = vadd.f32 %v716, %v719
      %vm721 = vweird.f32 %v600
      %vm722 = vweird.f32 %v716
      %vm723 = vmor %vm721, %vm722
      %v724 = vsel %vm723, %v716, %v720
      %v725 = vand.u32 2147483647, %v600
      %vm726 = vcmp.eq.f32.partialorder %v725, 8.507059e+37
      %v727 = vand.u32 %v600, 2147483648
      %v728 = vor.u32 1.1754944e-38, %v727
      %v729 = vsel %vm726, %v728, %v724
      %v730 = vmul.f32 %v471, %v729
      %v731 = vrcp.pop %v601
      %v732 = vmul.f32 %v601, %v731
      %v733 = vsub.f32 1.0, %v732
      %v734 = vmul.f32 %v731, %v733
      %v735 = vadd.f32 %v731, %v734
      %vm736 = vweird.f32 %v601
      %vm737 = vweird.f32 %v731
      %vm738 = vmor %vm736, %vm737
      %v739 = vsel %vm738, %v731, %v735
      %v740 = vand.u32 2147483647, %v601
      %vm741 = vcmp.eq.f32.partialorder %v740, 8.507059e+37
      %v742 = vand.u32 %v601, 2147483648
      %v743 = vor.u32 1.1754944e-38, %v742
      %v744 = vsel %vm741, %v743, %v739
      %v745 = vmul.f32 %v473, %v744
      %v746 = vrcp.pop %v602
      %v747 = vmul.f32 %v602, %v746
      %v748 = vsub.f32 1.0, %v747
      %v749 = vmul.f32 %v746, %v748
      %v750 = vadd.f32 %v746, %v749
      %vm751 = vweird.f32 %v602
      %vm752 = vweird.f32 %v746
      %vm753 = vmor %vm751, %vm752
      %v754 = vsel %vm753, %v746, %v750
      %v755 = vand.u32 2147483647, %v602
      %vm756 = vcmp.eq.f32.partialorder %v755, 8.507059e+37
      %v757 = vand.u32 %v602, 2147483648
      %v758 = vor.u32 1.1754944e-38, %v757
      %v759 = vsel %vm756, %v758, %v754
      %v760 = vmul.f32 %v475, %v759
      %v761 = vrcp.pop %v603
      %v762 = vmul.f32 %v603, %v761
      %v763 = vsub.f32 1.0, %v762
      %v764 = vmul.f32 %v761, %v763
      %v765 = vadd.f32 %v761, %v764
      %vm766 = vweird.f32 %v603
      %vm767 = vweird.f32 %v761
      %vm768 = vmor %vm766, %vm767
      %v769 = vsel %vm768, %v761, %v765
      %v770 = vand.u32 2147483647, %v603
      %vm771 = vcmp.eq.f32.partialorder %v770, 8.507059e+37
      %v772 = vand.u32 %v603, 2147483648
      %v773 = vor.u32 1.1754944e-38, %v772
      %v774 = vsel %vm771, %v773, %v769
      %v775 = vmul.f32 %v477, %v774
      %v776 = vrcp.pop %v604
      %v777 = vmul.f32 %v604, %v776
      %v778 = vsub.f32 1.0, %v777
      %v779 = vmul.f32 %v776, %v778
      %v780 = vadd.f32 %v776, %v779
      %vm781 = vweird.f32 %v604
      %vm782 = vweird.f32 %v776
      %vm783 = vmor %vm781, %vm782
      %v784 = vsel %vm783, %v776, %v780
      %v785 = vand.u32 2147483647, %v604
      %vm786 = vcmp.eq.f32.partialorder %v785, 8.507059e+37
      %v787 = vand.u32 %v604, 2147483648
      %v788 = vor.u32 1.1754944e-38, %v787
      %v789 = vsel %vm786, %v788, %v784
      %v790 = vmul.f32 %v479, %v789
      %v791 = vrcp.pop %v605
      %v792 = vmul.f32 %v605, %v791
      %v793 = vsub.f32 1.0, %v792
      %v794 = vmul.f32 %v791, %v793
      %v795 = vadd.f32 %v791, %v794
      %vm796 = vweird.f32 %v605
      %vm797 = vweird.f32 %v791
      %vm798 = vmor %vm796, %vm797
      %v799 = vsel %vm798, %v791, %v795
      %v800 = vand.u32 2147483647, %v605
      %vm801 = vcmp.eq.f32.partialorder %v800, 8.507059e+37
      %v802 = vand.u32 %v605, 2147483648
      %v803 = vor.u32 1.1754944e-38, %v802
      %v804 = vsel %vm801, %v803, %v799
      %v805 = vmul.f32 %v481, %v804
      %v806 = vrcp.pop %v606
      %v807 = vmul.f32 %v606, %v806
      %v808 = vsub.f32 1.0, %v807
      %v809 = vmul.f32 %v806, %v808
      %v810 = vadd.f32 %v806, %v809
      %vm811 = vweird.f32 %v606
      %vm812 = vweird.f32 %v806
      %vm813 = vmor %vm811, %vm812
      %v814 = vsel %vm813, %v806, %v810
      %v815 = vand.u32 2147483647, %v606
      %vm816 = vcmp.eq.f32.partialorder %v815, 8.507059e+37
      %v817 = vand.u32 %v606, 2147483648
      %v818 = vor.u32 1.1754944e-38, %v817
      %v819 = vsel %vm816, %v818, %v814
      %v820 = vmul.f32 %v483, %v819
      %v821 = vrcp.pop %v607
      %v822 = vmul.f32 %v607, %v821
      %v823 = vsub.f32 1.0, %v822
      %v824 = vmul.f32 %v821, %v823
      %v825 = vadd.f32 %v821, %v824
      %vm826 = vweird.f32 %v607
      %vm827 = vweird.f32 %v821
      %vm828 = vmor %vm826, %vm827
      %v829 = vsel %vm828, %v821, %v825
      %v830 = vand.u32 2147483647, %v607
      %vm831 = vcmp.eq.f32.partialorder %v830, 8.507059e+37
      %v832 = vand.u32 %v607, 2147483648
      %v833 = vor.u32 1.1754944e-38, %v832
      %v834 = vsel %vm831, %v833, %v829
      %v835 = vmul.f32 %v485, %v834
      %v836 = vrcp.pop %v608
      %v837 = vmul.f32 %v608, %v836
      %v838 = vsub.f32 1.0, %v837
      %v839 = vmul.f32 %v836, %v838
      %v840 = vadd.f32 %v836, %v839
      %vm841 = vweird.f32 %v608
      %vm842 = vweird.f32 %v836
      %vm843 = vmor %vm841, %vm842
      %v844 = vsel %vm843, %v836, %v840
      %v845 = vand.u32 2147483647, %v608
      %vm846 = vcmp.eq.f32.partialorder %v845, 8.507059e+37
      %v847 = vand.u32 %v608, 2147483648
      %v848 = vor.u32 1.1754944e-38, %v847
      %v849 = vsel %vm846, %v848, %v844
      %v850 = vmul.f32 %v487, %v849
      %v851 = vrcp.pop %v609
      %v852 = vmul.f32 %v609, %v851
      %v853 = vsub.f32 1.0, %v852
      %v854 = vmul.f32 %v851, %v853
      %v855 = vadd.f32 %v851, %v854
      %vm856 = vweird.f32 %v609
      %vm857 = vweird.f32 %v851
      %vm858 = vmor %vm856, %vm857
      %v859 = vsel %vm858, %v851, %v855
      %v860 = vand.u32 2147483647, %v609
      %vm861 = vcmp.eq.f32.partialorder %v860, 8.507059e+37
      %v862 = vand.u32 %v609, 2147483648
      %v863 = vor.u32 1.1754944e-38, %v862
      %v864 = vsel %vm861, %v863, %v859
      %v865 = vmul.f32 %v489, %v864
      %867 = vset.pattern.permute.xlu0 32
      %868 = vperm.xlu0 %867, %v640
      %v869 = vpop.permute.xlu0 %868
      %872 = vset.pattern.permute.xlu0 32
      %873 = vperm.xlu0 %872, %v655
      %v874 = vpop.permute.xlu0 %873
      %877 = vset.pattern.permute.xlu0 32
      %878 = vperm.xlu0 %877, %v670
      %v879 = vpop.permute.xlu0 %878
      %882 = vset.pattern.permute.xlu0 32
      %883 = vperm.xlu0 %882, %v685
      %v884 = vpop.permute.xlu0 %883
      %887 = vset.pattern.permute.xlu0 32
      %888 = vperm.xlu0 %887, %v700
      %v889 = vpop.permute.xlu0 %888
      %892 = vset.pattern.permute.xlu0 32
      %893 = vperm.xlu0 %892, %v715
      %v894 = vpop.permute.xlu0 %893
      %897 = vset.pattern.permute.xlu0 32
      %898 = vperm.xlu0 %897, %v730
      %v899 = vpop.permute.xlu0 %898
      %902 = vset.pattern.permute.xlu0 32
      %903 = vperm.xlu0 %902, %v745
      %v904 = vpop.permute.xlu0 %903
      %907 = vset.pattern.permute.xlu0 32
      %908 = vperm.xlu0 %907, %v760
      %v909 = vpop.permute.xlu0 %908
      %912 = vset.pattern.permute.xlu0 32
      %913 = vperm.xlu0 %912, %v775
      %v914 = vpop.permute.xlu0 %913
      %917 = vset.pattern.permute.xlu0 32
      %918 = vperm.xlu0 %917, %v790
      %v919 = vpop.permute.xlu0 %918
      %922 = vset.pattern.permute.xlu0 32
      %923 = vperm.xlu0 %922, %v805
      %v924 = vpop.permute.xlu0 %923
      %927 = vset.pattern.permute.xlu0 32
      %928 = vperm.xlu0 %927, %v820
      %v929 = vpop.permute.xlu0 %928
      %932 = vset.pattern.permute.xlu0 32
      %933 = vperm.xlu0 %932, %v835
      %v934 = vpop.permute.xlu0 %933
      %937 = vset.pattern.permute.xlu0 32
      %938 = vperm.xlu0 %937, %v850
      %v939 = vpop.permute.xlu0 %938
      %942 = vset.pattern.permute.xlu0 32
      %943 = vperm.xlu0 %942, %v865
      %v944 = vpop.permute.xlu0 %943
      %v946 = vmul.f32 %v869, %v136
      %v947 = vmul.f32 %v874, %v137
      %v948 = vmul.f32 %v879, %v138
      %v949 = vmul.f32 %v884, %v139
      %v950 = vmul.f32 %v889, %v140
      %v951 = vmul.f32 %v894, %v141
      %v952 = vmul.f32 %v899, %v142
      %v953 = vmul.f32 %v904, %v143
      %v954 = vmul.f32 %v909, %v144
      %v955 = vmul.f32 %v914, %v145
      %v956 = vmul.f32 %v919, %v146
      %v957 = vmul.f32 %v924, %v147
      %v958 = vmul.f32 %v929, %v148
      %v959 = vmul.f32 %v934, %v149
      %v960 = vmul.f32 %v939, %v150
      %v961 = vmul.f32 %v944, %v151
      %v962 = vrot.slane %v946, 4
      %v963 = vadd.f32 %v946, %v962
      %v964 = vrot.slane %v963, 2
      %v965 = vadd.f32 %v963, %v964
      %v966 = vrot.slane %v965, 1
      %v967 = vadd.f32 %v965, %v966
      %v968 = vrot.slane %v947, 4
      %v969 = vadd.f32 %v947, %v968
      %v970 = vrot.slane %v969, 2
      %v971 = vadd.f32 %v969, %v970
      %v972 = vrot.slane %v971, 1
      %v973 = vadd.f32 %v971, %v972
      %v974 = vrot.slane %v948, 4
      %v975 = vadd.f32 %v948, %v974
      %v976 = vrot.slane %v975, 2
      %v977 = vadd.f32 %v975, %v976
      %v978 = vrot.slane %v977, 1
      %v979 = vadd.f32 %v977, %v978
      %v980 = vrot.slane %v949, 4
      %v981 = vadd.f32 %v949, %v980
      %v982 = vrot.slane %v981, 2
      %v983 = vadd.f32 %v981, %v982
      %v984 = vrot.slane %v983, 1
      %v985 = vadd.f32 %v983, %v984
      %v986 = vrot.slane %v950, 4
      %v987 = vadd.f32 %v950, %v986
      %v988 = vrot.slane %v987, 2
      %v989 = vadd.f32 %v987, %v988
      %v990 = vrot.slane %v989, 1
      %v991 = vadd.f32 %v989, %v990
      %v992 = vrot.slane %v951, 4
      %v993 = vadd.f32 %v951, %v992
      %v994 = vrot.slane %v993, 2
      %v995 = vadd.f32 %v993, %v994
      %v996 = vrot.slane %v995, 1
      %v997 = vadd.f32 %v995, %v996
      %v998 = vrot.slane %v952, 4
      %v999 = vadd.f32 %v952, %v998
      %v1000 = vrot.slane %v999, 2
      %v1001 = vadd.f32 %v999, %v1000
      %v1002 = vrot.slane %v1001, 1
      %v1003 = vadd.f32 %v1001, %v1002
      %v1004 = vrot.slane %v953, 4
      %v1005 = vadd.f32 %v953, %v1004
      %v1006 = vrot.slane %v1005, 2
      %v1007 = vadd.f32 %v1005, %v1006
      %v1008 = vrot.slane %v1007, 1
      %v1009 = vadd.f32 %v1007, %v1008
      %v1010 = vrot.slane %v954, 4
      %v1011 = vadd.f32 %v954, %v1010
      %v1012 = vrot.slane %v1011, 2
      %v1013 = vadd.f32 %v1011, %v1012
      %v1014 = vrot.slane %v1013, 1
      %v1015 = vadd.f32 %v1013, %v1014
      %v1016 = vrot.slane %v955, 4
      %v1017 = vadd.f32 %v955, %v1016
      %v1018 = vrot.slane %v1017, 2
      %v1019 = vadd.f32 %v1017, %v1018
      %v1020 = vrot.slane %v1019, 1
      %v1021 = vadd.f32 %v1019, %v1020
      %v1022 = vrot.slane %v956, 4
      %v1023 = vadd.f32 %v956, %v1022
      %v1024 = vrot.slane %v1023, 2
      %v1025 = vadd.f32 %v1023, %v1024
      %v1026 = vrot.slane %v1025, 1
      %v1027 = vadd.f32 %v1025, %v1026
      %v1028 = vrot.slane %v957, 4
      %v1029 = vadd.f32 %v957, %v1028
      %v1030 = vrot.slane %v1029, 2
      %v1031 = vadd.f32 %v1029, %v1030
      %v1032 = vrot.slane %v1031, 1
      %v1033 = vadd.f32 %v1031, %v1032
      %v1034 = vrot.slane %v958, 4
      %v1035 = vadd.f32 %v958, %v1034
      %v1036 = vrot.slane %v1035, 2
      %v1037 = vadd.f32 %v1035, %v1036
      %v1038 = vrot.slane %v1037, 1
      %v1039 = vadd.f32 %v1037, %v1038
      %v1040 = vrot.slane %v959, 4
      %v1041 = vadd.f32 %v959, %v1040
      %v1042 = vrot.slane %v1041, 2
      %v1043 = vadd.f32 %v1041, %v1042
      %v1044 = vrot.slane %v1043, 1
      %v1045 = vadd.f32 %v1043, %v1044
      %v1046 = vrot.slane %v960, 4
      %v1047 = vadd.f32 %v960, %v1046
      %v1048 = vrot.slane %v1047, 2
      %v1049 = vadd.f32 %v1047, %v1048
      %v1050 = vrot.slane %v1049, 1
      %v1051 = vadd.f32 %v1049, %v1050
      %v1052 = vrot.slane %v961, 4
      %v1053 = vadd.f32 %v961, %v1052
      %v1054 = vrot.slane %v1053, 2
      %v1055 = vadd.f32 %v1053, %v1054
      %v1056 = vrot.slane %v1055, 1
      %v1057 = vadd.f32 %v1055, %v1056
      %v1058 = vmax.f32 %v967, 0.0
      %v1059 = vmax.f32 %v973, 0.0
      %v1060 = vmax.f32 %v979, 0.0
      %v1061 = vmax.f32 %v985, 0.0
      %v1062 = vmax.f32 %v991, 0.0
      %v1063 = vmax.f32 %v997, 0.0
      %v1064 = vmax.f32 %v1003, 0.0
      %v1065 = vmax.f32 %v1009, 0.0
      %v1066 = vmax.f32 %v1015, 0.0
      %v1067 = vmax.f32 %v1021, 0.0
      %v1068 = vmax.f32 %v1027, 0.0
      %v1069 = vmax.f32 %v1033, 0.0
      %v1070 = vmax.f32 %v1039, 0.0
      %v1071 = vmax.f32 %v1045, 0.0
      %v1072 = vmax.f32 %v1051, 0.0
      %v1073 = vmax.f32 %v1057, 0.0
      %v1074 = vpack.c.bf16 %v1058, %v1058
      %v1075 = vpack.c.bf16 %v1059, %v1059
      %v1076 = vpack.c.bf16 %v1060, %v1060
      %v1077 = vpack.c.bf16 %v1061, %v1061
      %v1078 = vpack.c.bf16 %v1062, %v1062
      %v1079 = vpack.c.bf16 %v1063, %v1063
      %v1080 = vpack.c.bf16 %v1064, %v1064
      %v1081 = vpack.c.bf16 %v1065, %v1065
      %v1082 = vpack.c.bf16 %v1066, %v1066
      %v1083 = vpack.c.bf16 %v1067, %v1067
      %v1084 = vpack.c.bf16 %v1068, %v1068
      %v1085 = vpack.c.bf16 %v1069, %v1069
      %v1086 = vpack.c.bf16 %v1070, %v1070
      %v1087 = vpack.c.bf16 %v1071, %v1071
      %v1088 = vpack.c.bf16 %v1072, %v1072
      %v1089 = vpack.c.bf16 %v1073, %v1073
      %v1106 = vunpack.c.l.b16 %v1074
      %v1107 = vunpack.c.l.b16 %v1075
      %v1108 = vunpack.c.l.b16 %v1076
      %v1109 = vunpack.c.l.b16 %v1077
      %v1110 = vunpack.c.l.b16 %v1078
      %v1111 = vunpack.c.l.b16 %v1079
      %v1112 = vunpack.c.l.b16 %v1080
      %v1113 = vunpack.c.l.b16 %v1081
      %v1114 = vunpack.c.l.b16 %v1082
      %v1115 = vunpack.c.l.b16 %v1083
      %v1116 = vunpack.c.l.b16 %v1084
      %v1117 = vunpack.c.l.b16 %v1085
      %v1118 = vunpack.c.l.b16 %v1086
      %v1119 = vunpack.c.l.b16 %v1087
      %v1120 = vunpack.c.l.b16 %v1088
      %v1121 = vunpack.c.l.b16 %v1089
      %v1122 = vsel %vm378, %v1107, %v1106
      %v1123 = vsel %vm380, %v1108, %v1122
      %v1124 = vsel %vm382, %v1109, %v1123
      %v1125 = vsel %vm384, %v1110, %v1124
      %v1126 = vsel %vm386, %v1111, %v1125
      %v1127 = vsel %vm388, %v1112, %v1126
      %v1128 = vsel %vm390, %v1113, %v1127
      %v1129 = vsel %vm378, %v1115, %v1114
      %v1130 = vsel %vm380, %v1116, %v1129
      %v1131 = vsel %vm382, %v1117, %v1130
      %v1132 = vsel %vm384, %v1118, %v1131
      %v1133 = vsel %vm386, %v1119, %v1132
      %v1134 = vsel %vm388, %v1120, %v1133
      %v1135 = vsel %vm390, %v1121, %v1134
      %v1136 = vpack.c.b16 %v1128, %v1128
      %v1137 = vpack.c.b16 %v1135, %v1135
      %1140 = vst [vmem:[%s118] sm:$0xf] %v1136
      %1141 = vst [vmem:[%s118 + $0x4] sm:$0xf] %v1137
      %s1142 = smul.u32 2, %s12
      %p1143 = scmp.lt.s32.totalorder %s1142, 3
      %s1144 = scalar_select %p1143, %s1142, 3
      %s1145 = smul.addr %s1144, 4
      %s1146 = scalar_lea.vmem %s1, %s1145
      // Predicated region
      $region25: #{gat_conv_forward.5} parent=23 // pred_check
        %p1147 = pneg %p56
      $region26: #{gat_conv_forward.5} parent=23 // pred_check_branch
        %1149 = sbr.rel (%p1147) target = $region28
      $region27: #{gat_conv_forward.5} parent=23 // pred_region
        %s1150 = smul.u32 2, %s12
      $region28: #{gat_conv_forward.5} parent=23 // pred_fallthru
        _
    $region24: #{gat_conv_forward.5} parent=5 // pred_fallthru
      _
    %p1151 = scmp.le.s32.totalorder 2, %s7
    // Predicated region
    $region29: #{gat_conv_forward.5} parent=5 // pred_check
      %p1152 = pneg %p1151
    $region30: #{gat_conv_forward.5} parent=5 // pred_check_branch
      %1154 = sbr.rel (%p1152) target = $region32
    $region31: #{gat_conv_forward.5} parent=5 // pred_region
      %s1155 = ssub.s32 %s7, 2
      // Predicated region
      $region33: #{gat_conv_forward.5} parent=31 // pred_check
        %p1156 = pneg %p62
      $region34: #{gat_conv_forward.5} parent=31 // pred_check_branch
        %1158 = sbr.rel (%p1156) target = $region36
      $region35: #{gat_conv_forward.5} parent=31 // pred_region
        %s1159 = smul.u32 2, %s13
        %p1160 = scmp.lt.s32.totalorder %s1159, 3
        %s1161 = scalar_select %p1160, %s1159, 3
        %s1162 = smul.addr %s1161, 4
        %s1163 = scalar_lea.vmem %s1, %s1162
      $region36: #{gat_conv_forward.5} parent=31 // pred_fallthru
        _
    $region32: #{gat_conv_forward.5} parent=5 // pred_fallthru
      _
  $region6: #{gat_conv_forward.5} parent=0 // loop_footer
    %s11 = sadd.s32 1, %s7
  $region7: #{gat_conv_forward.5} parent=0 // loop_footer_branch
    %6 = sbr.rel target = $region3
  $region8: #{gat_conv_forward.5} parent=0 // loop_exit
    _

// kernel: gat_conv_forward.7
$region0: #{gat_conv_forward.7}
  #allocation0 [shape = 'u32[]', space=smem, size = 0x4, offset = 0x4, fixed_abs, tag = 'smem constant byte address 0x4 - core index']
  #allocation1 [shape = 'u32[72,128]{1,0:T(1,128)}', space=vmem, size = 0x9000, scoped, tag = 'internal scratch']
  %s0 = inlined_call_operand.vmem [shape: bf16[16,8,128], index: 0, kind: input, shape index: {}]
  %s1 = inlined_call_operand.vmem [shape: f32[16,128], index: 1, kind: output, shape index: {}]
  %s2 = sld [smem:[#allocation0]]
  $region14: #{gat_conv_forward.7} parent=0
    _
  %s4 = ssub.s32 1, %s2
  %s5 = scalar_select 0, %s4, %s2
  // Predicated region
  $region2: #{gat_conv_forward.7} parent=0 // pred_check
    _
  $region3: #{gat_conv_forward.7} parent=0 // pred_check_branch
    %7 = sbr.rel (0) target = $region5
  $region4: #{gat_conv_forward.7} parent=0 // pred_region
    _
  $region5: #{gat_conv_forward.7} parent=0 // pred_fallthru
    _
  %v8 = vld [vmem:[%s0] sm:$0xf]
  %v9 = vld [vmem:[%s0 + $0x4] sm:$0xf]
  %v10 = vld [vmem:[%s0 + $0x8] sm:$0xf]
  %v11 = vld [vmem:[%s0 + $0xc] sm:$0xf]
  %v12 = vld [vmem:[%s0 + $0x10] sm:$0xf]
  %v13 = vld [vmem:[%s0 + $0x14] sm:$0xf]
  %v14 = vld [vmem:[%s0 + $0x18] sm:$0xf]
  %v15 = vld [vmem:[%s0 + $0x1c] sm:$0xf]
  %v16 = vld [vmem:[%s0 + $0x20] sm:$0xf]
  %v17 = vld [vmem:[%s0 + $0x24] sm:$0xf]
  %v18 = vld [vmem:[%s0 + $0x28] sm:$0xf]
  %v19 = vld [vmem:[%s0 + $0x2c] sm:$0xf]
  %v20 = vld [vmem:[%s0 + $0x30] sm:$0xf]
  %v21 = vld [vmem:[%s0 + $0x34] sm:$0xf]
  %v22 = vld [vmem:[%s0 + $0x38] sm:$0xf]
  %v23 = vld [vmem:[%s0 + $0x3c] sm:$0xf]
  %v24 = vunpack.c.l.bf16 %v8
  %v25 = vunpack.c.l.bf16 %v9
  %v26 = vunpack.c.l.bf16 %v10
  %v27 = vunpack.c.l.bf16 %v11
  %v28 = vunpack.c.l.bf16 %v12
  %v29 = vunpack.c.l.bf16 %v13
  %v30 = vunpack.c.l.bf16 %v14
  %v31 = vunpack.c.l.bf16 %v15
  %v32 = vunpack.c.l.bf16 %v16
  %v33 = vunpack.c.l.bf16 %v17
  %v34 = vunpack.c.l.bf16 %v18
  %v35 = vunpack.c.l.bf16 %v19
  %v36 = vunpack.c.l.bf16 %v20
  %v37 = vunpack.c.l.bf16 %v21
  %v38 = vunpack.c.l.bf16 %v22
  %v39 = vunpack.c.l.bf16 %v23
  %v40 = vperm.slane %v24, 0
  %v41 = vperm.slane %v25, 0
  %v42 = vperm.slane %v26, 0
  %v43 = vperm.slane %v27, 0
  %v44 = vperm.slane %v28, 0
  %v45 = vperm.slane %v29, 0
  %v46 = vperm.slane %v30, 0
  %v47 = vperm.slane %v31, 0
  %v48 = vperm.slane %v32, 0
  %v49 = vperm.slane %v33, 0
  %v50 = vperm.slane %v34, 0
  %v51 = vperm.slane %v35, 0
  %v52 = vperm.slane %v36, 0
  %v53 = vperm.slane %v37, 0
  %v54 = vperm.slane %v38, 0
  %v55 = vperm.slane %v39, 0
  %72 = vrot.lane.b32.xlu0 %v24, 127
  %v73 = vpop.permute.xlu0 %72
  %74 = vrot.lane.b32.xlu0 %v25, 127
  %v75 = vpop.permute.xlu0 %74
  %76 = vrot.lane.b32.xlu0 %v26, 127
  %v77 = vpop.permute.xlu0 %76
  %78 = vrot.lane.b32.xlu0 %v27, 127
  %v79 = vpop.permute.xlu0 %78
  %80 = vrot.lane.b32.xlu0 %v28, 127
  %v81 = vpop.permute.xlu0 %80
  %82 = vrot.lane.b32.xlu0 %v29, 127
  %v83 = vpop.permute.xlu0 %82
  %84 = vrot.lane.b32.xlu0 %v30, 127
  %v85 = vpop.permute.xlu0 %84
  %86 = vrot.lane.b32.xlu0 %v31, 127
  %v87 = vpop.permute.xlu0 %86
  %88 = vrot.lane.b32.xlu0 %v32, 127
  %v89 = vpop.permute.xlu0 %88
  %90 = vrot.lane.b32.xlu0 %v33, 127
  %v91 = vpop.permute.xlu0 %90
  %92 = vrot.lane.b32.xlu0 %v34, 127
  %v93 = vpop.permute.xlu0 %92
  %94 = vrot.lane.b32.xlu0 %v35, 127
  %v95 = vpop.permute.xlu0 %94
  %96 = vrot.lane.b32.xlu0 %v36, 127
  %v97 = vpop.permute.xlu0 %96
  %98 = vrot.lane.b32.xlu0 %v37, 127
  %v99 = vpop.permute.xlu0 %98
  %100 = vrot.lane.b32.xlu0 %v38, 127
  %v101 = vpop.permute.xlu0 %100
  %102 = vrot.lane.b32.xlu0 %v39, 127
  %v103 = vpop.permute.xlu0 %102
  %v120 = vadd.f32 %v40, %v73
  %v121 = vadd.f32 %v41, %v75
  %v122 = vadd.f32 %v42, %v77
  %v123 = vadd.f32 %v43, %v79
  %v124 = vadd.f32 %v44, %v81
  %v125 = vadd.f32 %v45, %v83
  %v126 = vadd.f32 %v46, %v85
  %v127 = vadd.f32 %v47, %v87
  %v128 = vadd.f32 %v48, %v89
  %v129 = vadd.f32 %v49, %v91
  %v130 = vadd.f32 %v50, %v93
  %v131 = vadd.f32 %v51, %v95
  %v132 = vadd.f32 %v52, %v97
  %v133 = vadd.f32 %v53, %v99
  %v134 = vadd.f32 %v54, %v101
  %v135 = vadd.f32 %v55, %v103
  %vm136 = vcmp.ge.f32.partialorder %v120, 0.0
  %vm137 = vcmp.ge.f32.partialorder %v121, 0.0
  %vm138 = vcmp.ge.f32.partialorder %v122, 0.0
  %vm139 = vcmp.ge.f32.partialorder %v123, 0.0
  %vm140 = vcmp.ge.f32.partialorder %v124, 0.0
  %vm141 = vcmp.ge.f32.partialorder %v125, 0.0
  %vm142 = vcmp.ge.f32.partialorder %v126, 0.0
  %vm143 = vcmp.ge.f32.partialorder %v127, 0.0
  %vm144 = vcmp.ge.f32.partialorder %v128, 0.0
  %vm145 = vcmp.ge.f32.partialorder %v129, 0.0
  %vm146 = vcmp.ge.f32.partialorder %v130, 0.0
  %vm147 = vcmp.ge.f32.partialorder %v131, 0.0
  %vm148 = vcmp.ge.f32.partialorder %v132, 0.0
  %vm149 = vcmp.ge.f32.partialorder %v133, 0.0
  %vm150 = vcmp.ge.f32.partialorder %v134, 0.0
  %vm151 = vcmp.ge.f32.partialorder %v135, 0.0
  %v152 = vmul.f32 %v120, 0.2
  %v153 = vmul.f32 %v121, 0.2
  %v154 = vmul.f32 %v122, 0.2
  %v155 = vmul.f32 %v123, 0.2
  %v156 = vmul.f32 %v124, 0.2
  %v157 = vmul.f32 %v125, 0.2
  %v158 = vmul.f32 %v126, 0.2
  %v159 = vmul.f32 %v127, 0.2
  %v160 = vmul.f32 %v128, 0.2
  %v161 = vmul.f32 %v129, 0.2
  %v162 = vmul.f32 %v130, 0.2
  %v163 = vmul.f32 %v131, 0.2
  %v164 = vmul.f32 %v132, 0.2
  %v165 = vmul.f32 %v133, 0.2
  %v166 = vmul.f32 %v134, 0.2
  %v167 = vmul.f32 %v135, 0.2
  %v168 = vsel %vm136, %v120, %v152
  %v169 = vsel %vm137, %v121, %v153
  %v170 = vsel %vm138, %v122, %v154
  %v171 = vsel %vm139, %v123, %v155
  %v172 = vsel %vm140, %v124, %v156
  %v173 = vsel %vm141, %v125, %v157
  %v174 = vsel %vm142, %v126, %v158
  %v175 = vsel %vm143, %v127, %v159
  %v176 = vsel %vm144, %v128, %v160
  %v177 = vsel %vm145, %v129, %v161
  %v178 = vsel %vm146, %v130, %v162
  %v179 = vsel %vm147, %v131, %v163
  %v180 = vsel %vm148, %v132, %v164
  %v181 = vsel %vm149, %v133, %v165
  %v182 = vsel %vm150, %v134, %v166
  %v183 = vsel %vm151, %v135, %v167
  %200 = vset.pattern.permute.xlu0 16
  %201 = vperm.xlu0 %200, %v168
  %v202 = vpop.permute.xlu0 %201
  %203 = vset.pattern.permute.xlu0 16
  %204 = vperm.xlu0 %203, %v169
  %v205 = vpop.permute.xlu0 %204
  %206 = vset.pattern.permute.xlu0 16
  %207 = vperm.xlu0 %206, %v170
  %v208 = vpop.permute.xlu0 %207
  %209 = vset.pattern.permute.xlu0 16
  %210 = vperm.xlu0 %209, %v171
  %v211 = vpop.permute.xlu0 %210
  %212 = vset.pattern.permute.xlu0 16
  %213 = vperm.xlu0 %212, %v172
  %v214 = vpop.permute.xlu0 %213
  %215 = vset.pattern.permute.xlu0 16
  %216 = vperm.xlu0 %215, %v173
  %v217 = vpop.permute.xlu0 %216
  %218 = vset.pattern.permute.xlu0 16
  %219 = vperm.xlu0 %218, %v174
  %v220 = vpop.permute.xlu0 %219
  %221 = vset.pattern.permute.xlu0 16
  %222 = vperm.xlu0 %221, %v175
  %v223 = vpop.permute.xlu0 %222
  %224 = vset.pattern.permute.xlu0 16
  %225 = vperm.xlu0 %224, %v176
  %v226 = vpop.permute.xlu0 %225
  %227 = vset.pattern.permute.xlu0 16
  %228 = vperm.xlu0 %227, %v177
  %v229 = vpop.permute.xlu0 %228
  %230 = vset.pattern.permute.xlu0 16
  %231 = vperm.xlu0 %230, %v178
  %v232 = vpop.permute.xlu0 %231
  %233 = vset.pattern.permute.xlu0 16
  %234 = vperm.xlu0 %233, %v179
  %v235 = vpop.permute.xlu0 %234
  %236 = vset.pattern.permute.xlu0 16
  %237 = vperm.xlu0 %236, %v180
  %v238 = vpop.permute.xlu0 %237
  %239 = vset.pattern.permute.xlu0 16
  %240 = vperm.xlu0 %239, %v181
  %v241 = vpop.permute.xlu0 %240
  %242 = vset.pattern.permute.xlu0 16
  %243 = vperm.xlu0 %242, %v182
  %v244 = vpop.permute.xlu0 %243
  %245 = vset.pattern.permute.xlu0 16
  %246 = vperm.xlu0 %245, %v183
  %v247 = vpop.permute.xlu0 %246
  %v248 = vlaneseq
  %v249 = vand.u32 %v248, 127
  %v250 = vperm.slane %v202, %v249
  %v251 = vperm.slane %v205, %v249
  %v252 = vperm.slane %v208, %v249
  %v253 = vperm.slane %v211, %v249
  %v254 = vperm.slane %v214, %v249
  %v255 = vperm.slane %v217, %v249
  %v256 = vperm.slane %v220, %v249
  %v257 = vperm.slane %v223, %v249
  %v258 = vperm.slane %v226, %v249
  %v259 = vperm.slane %v229, %v249
  %v260 = vperm.slane %v232, %v249
  %v261 = vperm.slane %v235, %v249
  %v262 = vperm.slane %v238, %v249
  %v263 = vperm.slane %v241, %v249
  %v264 = vperm.slane %v244, %v249
  %v265 = vperm.slane %v247, %v249
  %vm266 = vcmask 1041409
  %v267 = vsel %vm266, %v251, %v250
  %vm268 = vcmask 1042434
  %v269 = vsel %vm268, %v252, %v267
  %vm270 = vcmask 1043459
  %v271 = vsel %vm270, %v253, %v269
  %vm272 = vcmask 1044484
  %v273 = vsel %vm272, %v254, %v271
  %vm274 = vcmask 1045509
  %v275 = vsel %vm274, %v255, %v273
  %vm276 = vcmask 1046534
  %v277 = vsel %vm276, %v256, %v275
  %vm278 = vcmask 1047559
  %v279 = vsel %vm278, %v257, %v277
  %v280 = vsel %vm266, %v259, %v258
  %v281 = vsel %vm268, %v260, %v280
  %v282 = vsel %vm270, %v261, %v281
  %v283 = vsel %vm272, %v262, %v282
  %v284 = vsel %vm274, %v263, %v283
  %v285 = vsel %vm276, %v264, %v284
  %v286 = vsel %vm278, %v265, %v285
  %vm289 = vcmask 64512
  %v290 = vsel %vm289, %v279, -inf
  %291 = vmax.xlane.f32.xlu0 %v290
  %v292 = vpop.xlane.xlu0 %291
  %v293 = vsel %vm289, %v286, -inf
  %294 = vmax.xlane.f32.xlu0 %v293
  %v295 = vpop.xlane.xlu0 %294
  %v298 = vperm.slane %v292, 0
  %v299 = vperm.slane %v292, 1
  %v300 = vperm.slane %v292, 2
  %v301 = vperm.slane %v292, 3
  %v302 = vperm.slane %v292, 4
  %v303 = vperm.slane %v292, 5
  %v304 = vperm.slane %v292, 6
  %v305 = vperm.slane %v292, 7
  %v306 = vperm.slane %v295, 0
  %v307 = vperm.slane %v295, 1
  %v308 = vperm.slane %v295, 2
  %v309 = vperm.slane %v295, 3
  %v310 = vperm.slane %v295, 4
  %v311 = vperm.slane %v295, 5
  %v312 = vperm.slane %v295, 6
  %v313 = vperm.slane %v295, 7
  %v330 = vsub.f32 %v168, %v298
  %v331 = vsub.f32 %v169, %v299
  %v332 = vsub.f32 %v170, %v300
  %v333 = vsub.f32 %v171, %v301
  %v334 = vsub.f32 %v172, %v302
  %v335 = vsub.f32 %v173, %v303
  %v336 = vsub.f32 %v174, %v304
  %v337 = vsub.f32 %v175, %v305
  %v338 = vsub.f32 %v176, %v306
  %v339 = vsub.f32 %v177, %v307
  %v340 = vsub.f32 %v178, %v308
  %v341 = vsub.f32 %v179, %v309
  %v342 = vsub.f32 %v180, %v310
  %v343 = vsub.f32 %v181, %v311
  %v344 = vsub.f32 %v182, %v312
  %v345 = vsub.f32 %v183, %v313
  %v346 = vmul.f32 %v330, 1.442695
  %v347 = vpow.pop %v346
  %v348 = vmul.f32 %v331, 1.442695
  %v349 = vpow.pop %v348
  %v350 = vmul.f32 %v332, 1.442695
  %v351 = vpow.pop %v350
  %v352 = vmul.f32 %v333, 1.442695
  %v353 = vpow.pop %v352
  %v354 = vmul.f32 %v334, 1.442695
  %v355 = vpow.pop %v354
  %v356 = vmul.f32 %v335, 1.442695
  %v357 = vpow.pop %v356
  %v358 = vmul.f32 %v336, 1.442695
  %v359 = vpow.pop %v358
  %v360 = vmul.f32 %v337, 1.442695
  %v361 = vpow.pop %v360
  %v362 = vmul.f32 %v338, 1.442695
  %v363 = vpow.pop %v362
  %v364 = vmul.f32 %v339, 1.442695
  %v365 = vpow.pop %v364
  %v366 = vmul.f32 %v340, 1.442695
  %v367 = vpow.pop %v366
  %v368 = vmul.f32 %v341, 1.442695
  %v369 = vpow.pop %v368
  %v370 = vmul.f32 %v342, 1.442695
  %v371 = vpow.pop %v370
  %v372 = vmul.f32 %v343, 1.442695
  %v373 = vpow.pop %v372
  %v374 = vmul.f32 %v344, 1.442695
  %v375 = vpow.pop %v374
  %v376 = vmul.f32 %v345, 1.442695
  %v377 = vpow.pop %v376
  %394 = vset.pattern.permute.xlu0 16
  %395 = vperm.xlu0 %394, %v347
  %v396 = vpop.permute.xlu0 %395
  %397 = vset.pattern.permute.xlu0 16
  %398 = vperm.xlu0 %397, %v349
  %v399 = vpop.permute.xlu0 %398
  %400 = vset.pattern.permute.xlu0 16
  %401 = vperm.xlu0 %400, %v351
  %v402 = vpop.permute.xlu0 %401
  %403 = vset.pattern.permute.xlu0 16
  %404 = vperm.xlu0 %403, %v353
  %v405 = vpop.permute.xlu0 %404
  %406 = vset.pattern.permute.xlu0 16
  %407 = vperm.xlu0 %406, %v355
  %v408 = vpop.permute.xlu0 %407
  %409 = vset.pattern.permute.xlu0 16
  %410 = vperm.xlu0 %409, %v357
  %v411 = vpop.permute.xlu0 %410
  %412 = vset.pattern.permute.xlu0 16
  %413 = vperm.xlu0 %412, %v359
  %v414 = vpop.permute.xlu0 %413
  %415 = vset.pattern.permute.xlu0 16
  %416 = vperm.xlu0 %415, %v361
  %v417 = vpop.permute.xlu0 %416
  %418 = vset.pattern.permute.xlu0 16
  %419 = vperm.xlu0 %418, %v363
  %v420 = vpop.permute.xlu0 %419
  %421 = vset.pattern.permute.xlu0 16
  %422 = vperm.xlu0 %421, %v365
  %v423 = vpop.permute.xlu0 %422
  %424 = vset.pattern.permute.xlu0 16
  %425 = vperm.xlu0 %424, %v367
  %v426 = vpop.permute.xlu0 %425
  %427 = vset.pattern.permute.xlu0 16
  %428 = vperm.xlu0 %427, %v369
  %v429 = vpop.permute.xlu0 %428
  %430 = vset.pattern.permute.xlu0 16
  %431 = vperm.xlu0 %430, %v371
  %v432 = vpop.permute.xlu0 %431
  %433 = vset.pattern.permute.xlu0 16
  %434 = vperm.xlu0 %433, %v373
  %v435 = vpop.permute.xlu0 %434
  %436 = vset.pattern.permute.xlu0 16
  %437 = vperm.xlu0 %436, %v375
  %v438 = vpop.permute.xlu0 %437
  %439 = vset.pattern.permute.xlu0 16
  %440 = vperm.xlu0 %439, %v377
  %v441 = vpop.permute.xlu0 %440
  %v442 = vperm.slane %v396, %v249
  %v443 = vperm.slane %v399, %v249
  %v444 = vperm.slane %v402, %v249
  %v445 = vperm.slane %v405, %v249
  %v446 = vperm.slane %v408, %v249
  %v447 = vperm.slane %v411, %v249
  %v448 = vperm.slane %v414, %v249
  %v449 = vperm.slane %v417, %v249
  %v450 = vperm.slane %v420, %v249
  %v451 = vperm.slane %v423, %v249
  %v452 = vperm.slane %v426, %v249
  %v453 = vperm.slane %v429, %v249
  %v454 = vperm.slane %v432, %v249
  %v455 = vperm.slane %v435, %v249
  %v456 = vperm.slane %v438, %v249
  %v457 = vperm.slane %v441, %v249
  %v458 = vsel %vm266, %v443, %v442
  %v459 = vsel %vm268, %v444, %v458
  %v460 = vsel %vm270, %v445, %v459
  %v461 = vsel %vm272, %v446, %v460
  %v462 = vsel %vm274, %v447, %v461
  %v463 = vsel %vm276, %v448, %v462
  %v464 = vsel %vm278, %v449, %v463
  %v465 = vsel %vm266, %v451, %v450
  %v466 = vsel %vm268, %v452, %v465
  %v467 = vsel %vm270, %v453, %v466
  %v468 = vsel %vm272, %v454, %v467
  %v469 = vsel %vm274, %v455, %v468
  %v470 = vsel %vm276, %v456, %v469
  %v471 = vsel %vm278, %v457, %v470
  %v474 = vsel %vm289, %v464, 0.0
  %475 = vadd.xlane.f32.xlu0 %v474
  %v476 = vpop.xlane.xlu0 %475
  %v477 = vsel %vm289, %v471, 0.0
  %478 = vadd.xlane.f32.xlu0 %v477
  %v479 = vpop.xlane.xlu0 %478
  %v482 = vperm.slane %v476, 0
  %v483 = vperm.slane %v476, 1
  %v484 = vperm.slane %v476, 2
  %v485 = vperm.slane %v476, 3
  %v486 = vperm.slane %v476, 4
  %v487 = vperm.slane %v476, 5
  %v488 = vperm.slane %v476, 6
  %v489 = vperm.slane %v476, 7
  %v490 = vperm.slane %v479, 0
  %v491 = vperm.slane %v479, 1
  %v492 = vperm.slane %v479, 2
  %v493 = vperm.slane %v479, 3
  %v494 = vperm.slane %v479, 4
  %v495 = vperm.slane %v479, 5
  %v496 = vperm.slane %v479, 6
  %v497 = vperm.slane %v479, 7
  %v514 = vrcp.pop %v482
  %v515 = vmul.f32 %v482, %v514
  %v516 = vsub.f32 1.0, %v515
  %v517 = vmul.f32 %v514, %v516
  %v518 = vadd.f32 %v514, %v517
  %vm519 = vweird.f32 %v482
  %vm520 = vweird.f32 %v514
  %vm521 = vmor %vm519, %vm520
  %v522 = vsel %vm521, %v514, %v518
  %v523 = vand.u32 2147483647, %v482
  %vm524 = vcmp.eq.f32.partialorder %v523, 8.507059e+37
  %v525 = vand.u32 %v482, 2147483648
  %v526 = vor.u32 1.1754944e-38, %v525
  %v527 = vsel %vm524, %v526, %v522
  %v528 = vmul.f32 %v347, %v527
  %v529 = vrcp.pop %v483
  %v530 = vmul.f32 %v483, %v529
  %v531 = vsub.f32 1.0, %v530
  %v532 = vmul.f32 %v529, %v531
  %v533 = vadd.f32 %v529, %v532
  %vm534 = vweird.f32 %v483
  %vm535 = vweird.f32 %v529
  %vm536 = vmor %vm534, %vm535
  %v537 = vsel %vm536, %v529, %v533
  %v538 = vand.u32 2147483647, %v483
  %vm539 = vcmp.eq.f32.partialorder %v538, 8.507059e+37
  %v540 = vand.u32 %v483, 2147483648
  %v541 = vor.u32 1.1754944e-38, %v540
  %v542 = vsel %vm539, %v541, %v537
  %v543 = vmul.f32 %v349, %v542
  %v544 = vrcp.pop %v484
  %v545 = vmul.f32 %v484, %v544
  %v546 = vsub.f32 1.0, %v545
  %v547 = vmul.f32 %v544, %v546
  %v548 = vadd.f32 %v544, %v547
  %vm549 = vweird.f32 %v484
  %vm550 = vweird.f32 %v544
  %vm551 = vmor %vm549, %vm550
  %v552 = vsel %vm551, %v544, %v548
  %v553 = vand.u32 2147483647, %v484
  %vm554 = vcmp.eq.f32.partialorder %v553, 8.507059e+37
  %v555 = vand.u32 %v484, 2147483648
  %v556 = vor.u32 1.1754944e-38, %v555
  %v557 = vsel %vm554, %v556, %v552
  %v558 = vmul.f32 %v351, %v557
  %v559 = vrcp.pop %v485
  %v560 = vmul.f32 %v485, %v559
  %v561 = vsub.f32 1.0, %v560
  %v562 = vmul.f32 %v559, %v561
  %v563 = vadd.f32 %v559, %v562
  %vm564 = vweird.f32 %v485
  %vm565 = vweird.f32 %v559
  %vm566 = vmor %vm564, %vm565
  %v567 = vsel %vm566, %v559, %v563
  %v568 = vand.u32 2147483647, %v485
  %vm569 = vcmp.eq.f32.partialorder %v568, 8.507059e+37
  %v570 = vand.u32 %v485, 2147483648
  %v571 = vor.u32 1.1754944e-38, %v570
  %v572 = vsel %vm569, %v571, %v567
  %v573 = vmul.f32 %v353, %v572
  %v574 = vrcp.pop %v486
  %v575 = vmul.f32 %v486, %v574
  %v576 = vsub.f32 1.0, %v575
  %v577 = vmul.f32 %v574, %v576
  %v578 = vadd.f32 %v574, %v577
  %vm579 = vweird.f32 %v486
  %vm580 = vweird.f32 %v574
  %vm581 = vmor %vm579, %vm580
  %v582 = vsel %vm581, %v574, %v578
  %v583 = vand.u32 2147483647, %v486
  %vm584 = vcmp.eq.f32.partialorder %v583, 8.507059e+37
  %v585 = vand.u32 %v486, 2147483648
  %v586 = vor.u32 1.1754944e-38, %v585
  %v587 = vsel %vm584, %v586, %v582
  %v588 = vmul.f32 %v355, %v587
  %v589 = vrcp.pop %v487
  %v590 = vmul.f32 %v487, %v589
  %v591 = vsub.f32 1.0, %v590
  %v592 = vmul.f32 %v589, %v591
  %v593 = vadd.f32 %v589, %v592
  %vm594 = vweird.f32 %v487
  %vm595 = vweird.f32 %v589
  %vm596 = vmor %vm594, %vm595
  %v597 = vsel %vm596, %v589, %v593
  %v598 = vand.u32 2147483647, %v487
  %vm599 = vcmp.eq.f32.partialorder %v598, 8.507059e+37
  %v600 = vand.u32 %v487, 2147483648
  %v601 = vor.u32 1.1754944e-38, %v600
  %v602 = vsel %vm599, %v601, %v597
  %v603 = vmul.f32 %v357, %v602
  %v604 = vrcp.pop %v488
  %v605 = vmul.f32 %v488, %v604
  %v606 = vsub.f32 1.0, %v605
  %v607 = vmul.f32 %v604, %v606
  %v608 = vadd.f32 %v604, %v607
  %vm609 = vweird.f32 %v488
  %vm610 = vweird.f32 %v604
  %vm611 = vmor %vm609, %vm610
  %v612 = vsel %vm611, %v604, %v608
  %v613 = vand.u32 2147483647, %v488
  %vm614 = vcmp.eq.f32.partialorder %v613, 8.507059e+37
  %v615 = vand.u32 %v488, 2147483648
  %v616 = vor.u32 1.1754944e-38, %v615
  %v617 = vsel %vm614, %v616, %v612
  %v618 = vmul.f32 %v359, %v617
  %v619 = vrcp.pop %v489
  %v620 = vmul.f32 %v489, %v619
  %v621 = vsub.f32 1.0, %v620
  %v622 = vmul.f32 %v619, %v621
  %v623 = vadd.f32 %v619, %v622
  %vm624 = vweird.f32 %v489
  %vm625 = vweird.f32 %v619
  %vm626 = vmor %vm624, %vm625
  %v627 = vsel %vm626, %v619, %v623
  %v628 = vand.u32 2147483647, %v489
  %vm629 = vcmp.eq.f32.partialorder %v628, 8.507059e+37
  %v630 = vand.u32 %v489, 2147483648
  %v631 = vor.u32 1.1754944e-38, %v630
  %v632 = vsel %vm629, %v631, %v627
  %v633 = vmul.f32 %v361, %v632
  %v634 = vrcp.pop %v490
  %v635 = vmul.f32 %v490, %v634
  %v636 = vsub.f32 1.0, %v635
  %v637 = vmul.f32 %v634, %v636
  %v638 = vadd.f32 %v634, %v637
  %vm639 = vweird.f32 %v490
  %vm640 = vweird.f32 %v634
  %vm641 = vmor %vm639, %vm640
  %v642 = vsel %vm641, %v634, %v638
  %v643 = vand.u32 2147483647, %v490
  %vm644 = vcmp.eq.f32.partialorder %v643, 8.507059e+37
  %v645 = vand.u32 %v490, 2147483648
  %v646 = vor.u32 1.1754944e-38, %v645
  %v647 = vsel %vm644, %v646, %v642
  %v648 = vmul.f32 %v363, %v647
  %v649 = vrcp.pop %v491
  %v650 = vmul.f32 %v491, %v649
  %v651 = vsub.f32 1.0, %v650
  %v652 = vmul.f32 %v649, %v651
  %v653 = vadd.f32 %v649, %v652
  %vm654 = vweird.f32 %v491
  %vm655 = vweird.f32 %v649
  %vm656 = vmor %vm654, %vm655
  %v657 = vsel %vm656, %v649, %v653
  %v658 = vand.u32 2147483647, %v491
  %vm659 = vcmp.eq.f32.partialorder %v658, 8.507059e+37
  %v660 = vand.u32 %v491, 2147483648
  %v661 = vor.u32 1.1754944e-38, %v660
  %v662 = vsel %vm659, %v661, %v657
  %v663 = vmul.f32 %v365, %v662
  %v664 = vrcp.pop %v492
  %v665 = vmul.f32 %v492, %v664
  %v666 = vsub.f32 1.0, %v665
  %v667 = vmul.f32 %v664, %v666
  %v668 = vadd.f32 %v664, %v667
  %vm669 = vweird.f32 %v492
  %vm670 = vweird.f32 %v664
  %vm671 = vmor %vm669, %vm670
  %v672 = vsel %vm671, %v664, %v668
  %v673 = vand.u32 2147483647, %v492
  %vm674 = vcmp.eq.f32.partialorder %v673, 8.507059e+37
  %v675 = vand.u32 %v492, 2147483648
  %v676 = vor.u32 1.1754944e-38, %v675
  %v677 = vsel %vm674, %v676, %v672
  %v678 = vmul.f32 %v367, %v677
  %v679 = vrcp.pop %v493
  %v680 = vmul.f32 %v493, %v679
  %v681 = vsub.f32 1.0, %v680
  %v682 = vmul.f32 %v679, %v681
  %v683 = vadd.f32 %v679, %v682
  %vm684 = vweird.f32 %v493
  %vm685 = vweird.f32 %v679
  %vm686 = vmor %vm684, %vm685
  %v687 = vsel %vm686, %v679, %v683
  %v688 = vand.u32 2147483647, %v493
  %vm689 = vcmp.eq.f32.partialorder %v688, 8.507059e+37
  %v690 = vand.u32 %v493, 2147483648
  %v691 = vor.u32 1.1754944e-38, %v690
  %v692 = vsel %vm689, %v691, %v687
  %v693 = vmul.f32 %v369, %v692
  %v694 = vrcp.pop %v494
  %v695 = vmul.f32 %v494, %v694
  %v696 = vsub.f32 1.0, %v695
  %v697 = vmul.f32 %v694, %v696
  %v698 = vadd.f32 %v694, %v697
  %vm699 = vweird.f32 %v494
  %vm700 = vweird.f32 %v694
  %vm701 = vmor %vm699, %vm700
  %v702 = vsel %vm701, %v694, %v698
  %v703 = vand.u32 2147483647, %v494
  %vm704 = vcmp.eq.f32.partialorder %v703, 8.507059e+37
  %v705 = vand.u32 %v494, 2147483648
  %v706 = vor.u32 1.1754944e-38, %v705
  %v707 = vsel %vm704, %v706, %v702
  %v708 = vmul.f32 %v371, %v707
  %v709 = vrcp.pop %v495
  %v710 = vmul.f32 %v495, %v709
  %v711 = vsub.f32 1.0, %v710
  %v712 = vmul.f32 %v709, %v711
  %v713 = vadd.f32 %v709, %v712
  %vm714 = vweird.f32 %v495
  %vm715 = vweird.f32 %v709
  %vm716 = vmor %vm714, %vm715
  %v717 = vsel %vm716, %v709, %v713
  %v718 = vand.u32 2147483647, %v495
  %vm719 = vcmp.eq.f32.partialorder %v718, 8.507059e+37
  %v720 = vand.u32 %v495, 2147483648
  %v721 = vor.u32 1.1754944e-38, %v720
  %v722 = vsel %vm719, %v721, %v717
  %v723 = vmul.f32 %v373, %v722
  %v724 = vrcp.pop %v496
  %v725 = vmul.f32 %v496, %v724
  %v726 = vsub.f32 1.0, %v725
  %v727 = vmul.f32 %v724, %v726
  %v728 = vadd.f32 %v724, %v727
  %vm729 = vweird.f32 %v496
  %vm730 = vweird.f32 %v724
  %vm731 = vmor %vm729, %vm730
  %v732 = vsel %vm731, %v724, %v728
  %v733 = vand.u32 2147483647, %v496
  %vm734 = vcmp.eq.f32.partialorder %v733, 8.507059e+37
  %v735 = vand.u32 %v496, 2147483648
  %v736 = vor.u32 1.1754944e-38, %v735
  %v737 = vsel %vm734, %v736, %v732
  %v738 = vmul.f32 %v375, %v737
  %v739 = vrcp.pop %v497
  %v740 = vmul.f32 %v497, %v739
  %v741 = vsub.f32 1.0, %v740
  %v742 = vmul.f32 %v739, %v741
  %v743 = vadd.f32 %v739, %v742
  %vm744 = vweird.f32 %v497
  %vm745 = vweird.f32 %v739
  %vm746 = vmor %vm744, %vm745
  %v747 = vsel %vm746, %v739, %v743
  %v748 = vand.u32 2147483647, %v497
  %vm749 = vcmp.eq.f32.partialorder %v748, 8.507059e+37
  %v750 = vand.u32 %v497, 2147483648
  %v751 = vor.u32 1.1754944e-38, %v750
  %v752 = vsel %vm749, %v751, %v747
  %v753 = vmul.f32 %v377, %v752
  %755 = vset.pattern.permute.xlu0 16
  %756 = vperm.xlu0 %755, %v528
  %v757 = vpop.permute.xlu0 %756
  %760 = vset.pattern.permute.xlu0 16
  %761 = vperm.xlu0 %760, %v543
  %v762 = vpop.permute.xlu0 %761
  %765 = vset.pattern.permute.xlu0 16
  %766 = vperm.xlu0 %765, %v558
  %v767 = vpop.permute.xlu0 %766
  %770 = vset.pattern.permute.xlu0 16
  %771 = vperm.xlu0 %770, %v573
  %v772 = vpop.permute.xlu0 %771
  %775 = vset.pattern.permute.xlu0 16
  %776 = vperm.xlu0 %775, %v588
  %v777 = vpop.permute.xlu0 %776
  %780 = vset.pattern.permute.xlu0 16
  %781 = vperm.xlu0 %780, %v603
  %v782 = vpop.permute.xlu0 %781
  %785 = vset.pattern.permute.xlu0 16
  %786 = vperm.xlu0 %785, %v618
  %v787 = vpop.permute.xlu0 %786
  %790 = vset.pattern.permute.xlu0 16
  %791 = vperm.xlu0 %790, %v633
  %v792 = vpop.permute.xlu0 %791
  %795 = vset.pattern.permute.xlu0 16
  %796 = vperm.xlu0 %795, %v648
  %v797 = vpop.permute.xlu0 %796
  %800 = vset.pattern.permute.xlu0 16
  %801 = vperm.xlu0 %800, %v663
  %v802 = vpop.permute.xlu0 %801
  %805 = vset.pattern.permute.xlu0 16
  %806 = vperm.xlu0 %805, %v678
  %v807 = vpop.permute.xlu0 %806
  %810 = vset.pattern.permute.xlu0 16
  %811 = vperm.xlu0 %810, %v693
  %v812 = vpop.permute.xlu0 %811
  %815 = vset.pattern.permute.xlu0 16
  %816 = vperm.xlu0 %815, %v708
  %v817 = vpop.permute.xlu0 %816
  %820 = vset.pattern.permute.xlu0 16
  %821 = vperm.xlu0 %820, %v723
  %v822 = vpop.permute.xlu0 %821
  %825 = vset.pattern.permute.xlu0 16
  %826 = vperm.xlu0 %825, %v738
  %v827 = vpop.permute.xlu0 %826
  %830 = vset.pattern.permute.xlu0 16
  %831 = vperm.xlu0 %830, %v753
  %v832 = vpop.permute.xlu0 %831
  %v834 = vmul.f32 %v757, %v24
  %v835 = vmul.f32 %v762, %v25
  %v836 = vmul.f32 %v767, %v26
  %v837 = vmul.f32 %v772, %v27
  %v838 = vmul.f32 %v777, %v28
  %v839 = vmul.f32 %v782, %v29
  %v840 = vmul.f32 %v787, %v30
  %v841 = vmul.f32 %v792, %v31
  %v842 = vmul.f32 %v797, %v32
  %v843 = vmul.f32 %v802, %v33
  %v844 = vmul.f32 %v807, %v34
  %v845 = vmul.f32 %v812, %v35
  %v846 = vmul.f32 %v817, %v36
  %v847 = vmul.f32 %v822, %v37
  %v848 = vmul.f32 %v827, %v38
  %v849 = vmul.f32 %v832, %v39
  %v850 = vrot.slane %v834, 4
  %v851 = vadd.f32 %v834, %v850
  %v852 = vrot.slane %v851, 2
  %v853 = vadd.f32 %v851, %v852
  %v854 = vrot.slane %v853, 1
  %v855 = vadd.f32 %v853, %v854
  %v856 = vrot.slane %v835, 4
  %v857 = vadd.f32 %v835, %v856
  %v858 = vrot.slane %v857, 2
  %v859 = vadd.f32 %v857, %v858
  %v860 = vrot.slane %v859, 1
  %v861 = vadd.f32 %v859, %v860
  %v862 = vrot.slane %v836, 4
  %v863 = vadd.f32 %v836, %v862
  %v864 = vrot.slane %v863, 2
  %v865 = vadd.f32 %v863, %v864
  %v866 = vrot.slane %v865, 1
  %v867 = vadd.f32 %v865, %v866
  %v868 = vrot.slane %v837, 4
  %v869 = vadd.f32 %v837, %v868
  %v870 = vrot.slane %v869, 2
  %v871 = vadd.f32 %v869, %v870
  %v872 = vrot.slane %v871, 1
  %v873 = vadd.f32 %v871, %v872
  %v874 = vrot.slane %v838, 4
  %v875 = vadd.f32 %v838, %v874
  %v876 = vrot.slane %v875, 2
  %v877 = vadd.f32 %v875, %v876
  %v878 = vrot.slane %v877, 1
  %v879 = vadd.f32 %v877, %v878
  %v880 = vrot.slane %v839, 4
  %v881 = vadd.f32 %v839, %v880
  %v882 = vrot.slane %v881, 2
  %v883 = vadd.f32 %v881, %v882
  %v884 = vrot.slane %v883, 1
  %v885 = vadd.f32 %v883, %v884
  %v886 = vrot.slane %v840, 4
  %v887 = vadd.f32 %v840, %v886
  %v888 = vrot.slane %v887, 2
  %v889 = vadd.f32 %v887, %v888
  %v890 = vrot.slane %v889, 1
  %v891 = vadd.f32 %v889, %v890
  %v892 = vrot.slane %v841, 4
  %v893 = vadd.f32 %v841, %v892
  %v894 = vrot.slane %v893, 2
  %v895 = vadd.f32 %v893, %v894
  %v896 = vrot.slane %v895, 1
  %v897 = vadd.f32 %v895, %v896
  %v898 = vrot.slane %v842, 4
  %v899 = vadd.f32 %v842, %v898
  %v900 = vrot.slane %v899, 2
  %v901 = vadd.f32 %v899, %v900
  %v902 = vrot.slane %v901, 1
  %v903 = vadd.f32 %v901, %v902
  %v904 = vrot.slane %v843, 4
  %v905 = vadd.f32 %v843, %v904
  %v906 = vrot.slane %v905, 2
  %v907 = vadd.f32 %v905, %v906
  %v908 = vrot.slane %v907, 1
  %v909 = vadd.f32 %v907, %v908
  %v910 = vrot.slane %v844, 4
  %v911 = vadd.f32 %v844, %v910
  %v912 = vrot.slane %v911, 2
  %v913 = vadd.f32 %v911, %v912
  %v914 = vrot.slane %v913, 1
  %v915 = vadd.f32 %v913, %v914
  %v916 = vrot.slane %v845, 4
  %v917 = vadd.f32 %v845, %v916
  %v918 = vrot.slane %v917, 2
  %v919 = vadd.f32 %v917, %v918
  %v920 = vrot.slane %v919, 1
  %v921 = vadd.f32 %v919, %v920
  %v922 = vrot.slane %v846, 4
  %v923 = vadd.f32 %v846, %v922
  %v924 = vrot.slane %v923, 2
  %v925 = vadd.f32 %v923, %v924
  %v926 = vrot.slane %v925, 1
  %v927 = vadd.f32 %v925, %v926
  %v928 = vrot.slane %v847, 4
  %v929 = vadd.f32 %v847, %v928
  %v930 = vrot.slane %v929, 2
  %v931 = vadd.f32 %v929, %v930
  %v932 = vrot.slane %v931, 1
  %v933 = vadd.f32 %v931, %v932
  %v934 = vrot.slane %v848, 4
  %v935 = vadd.f32 %v848, %v934
  %v936 = vrot.slane %v935, 2
  %v937 = vadd.f32 %v935, %v936
  %v938 = vrot.slane %v937, 1
  %v939 = vadd.f32 %v937, %v938
  %v940 = vrot.slane %v849, 4
  %v941 = vadd.f32 %v849, %v940
  %v942 = vrot.slane %v941, 2
  %v943 = vadd.f32 %v941, %v942
  %v944 = vrot.slane %v943, 1
  %v945 = vadd.f32 %v943, %v944
  %v962 = vsel %vm266, %v861, %v855
  %v963 = vsel %vm268, %v867, %v962
  %v964 = vsel %vm270, %v873, %v963
  %v965 = vsel %vm272, %v879, %v964
  %v966 = vsel %vm274, %v885, %v965
  %v967 = vsel %vm276, %v891, %v966
  %v968 = vsel %vm278, %v897, %v967
  %v969 = vsel %vm266, %v909, %v903
  %v970 = vsel %vm268, %v915, %v969
  %v971 = vsel %vm270, %v921, %v970
  %v972 = vsel %vm272, %v927, %v971
  %v973 = vsel %vm274, %v933, %v972
  %v974 = vsel %vm276, %v939, %v973
  %v975 = vsel %vm278, %v945, %v974
  %978 = vst [vmem:[%s1] sm:$0xff] %v968
  %979 = vst [vmem:[%s1 + $0x8] sm:$0xff] %v975
  // Predicated region
  $region6: #{gat_conv_forward.7} parent=0 // pred_check
    _
  $region7: #{gat_conv_forward.7} parent=0 // pred_check_branch
    %981 = sbr.rel (0) target = $region9
  $region8: #{gat_conv_forward.7} parent=0 // pred_region
    _
  $region9: #{gat_conv_forward.7} parent=0 // pred_fallthru
    _
  // Predicated region
  $region10: #{gat_conv_forward.7} parent=0 // pred_check
    _
  $region11: #{gat_conv_forward.7} parent=0 // pred_check_branch
    %983 = sbr.rel (0) target = $region13
  $region12: #{gat_conv_forward.7} parent=0 // pred_region
    _
  $region13: #{gat_conv_forward.7} parent=0 // pred_fallthru
    _

</llo_original>
